<compile_context>
chip_gen: v6e
topology: v6e:2x2x1
jax: 0.10.0
libtpu: 0.0.40
codegen_flags: <defaults>
</compile_context>

<pallas_src>
import jax
import jax.numpy as jnp
from jax.experimental import pallas as pl
from jax.experimental.pallas import tpu as pltpu

IN_F = 28 * 28            # 784
DIMS = [IN_F, 512, 256, 128, 64, 10]
LANE = 128
MAX_BATCH_TILE = 512      # large M amortizes grid-step overhead; VMEM stays tiny


def _round_up(n, m):
    return (n + m - 1) // m * m


def _batch_tiling(b):
    """Returns (b_pad, tile) with tile | b_pad, tile % 8 == 0, and >=2 grid steps
    once the padded batch reaches 256 rows (v7x has 2 TensorCores)."""
    b_pad = _round_up(b, 8)
    if b_pad < 256:
        return b_pad, b_pad                      # tiny batch: one small tile
    tile = min(MAX_BATCH_TILE, _round_up(b_pad // 2, LANE))
    b_pad = _round_up(b_pad, tile)
    if b_pad // tile < 2:
        b_pad = 2 * tile
    return b_pad, tile


def _mlp_kernel(x_ref,
                w1_ref, b1_ref,
                w2_ref, b2_ref,
                w3_ref, b3_ref,
                w4_ref, b4_ref,
                w5_ref, b5_ref,
                o_ref):
    def layer(h, w_ref, b_ref, relu):
        # bf16 x bf16 MXU matmul with f32 accumulation; bias add + ReLU in f32 (VPU).
        z = jnp.dot(h, w_ref[...], preferred_element_type=jnp.float32) + b_ref[...]
        if relu:
            z = jnp.maximum(z, 0.0).astype(jnp.bfloat16)
        return z

    h = x_ref[...].astype(jnp.bfloat16)     # f32 -> bf16 cast hidden under fc1 matmul
    h = layer(h, w1_ref, b1_ref, True)      # dropout == identity (eval mode)
    h = layer(h, w2_ref, b2_ref, True)
    h = layer(h, w3_ref, b3_ref, True)
    h = layer(h, w4_ref, b4_ref, True)
    o_ref[...] = layer(h, w5_ref, b5_ref, False)   # f32 (tile, 128), lane-dense store


def prepare_params(params):
    """One-time prep: pad feature dims to lane multiples (fc1's K stays 784 since x is
    fed unpadded), cast weights to bf16, biases to f32 (1, d_out_pad).  Returns a flat
    tuple (w1, b1, ..., w5, b5) to pass straight into deep_nn_forward."""
    prepped = []
    d_in_real = IN_F
    d_in_pad = IN_F
    for (w, bias) in params:
        d_in, d_out = w.shape
        assert d_in == d_in_real
        d_out_pad = _round_up(d_out, LANE)
        w_p = jnp.pad(w, ((0, d_in_pad - d_in),
                          (0, d_out_pad - d_out))).astype(jnp.bfloat16)
        b_p = jnp.pad(bias.reshape(1, -1),
                      ((0, 0), (0, d_out_pad - d_out))).astype(jnp.float32)
        prepped += [w_p, b_p]
        d_in_real = d_out
        d_in_pad = d_out_pad
    return tuple(prepped)


@jax.jit
def deep_nn_forward(x, flat_params):
    """x: (B, 1, 28, 28) or (B, 784) float32; flat_params from prepare_params.
    Returns (B, 10) float32 logits."""
    x = x.reshape(-1, IN_F)                  # x.view(-1, 28*28)
    b = x.shape[0]
    b_pad, tile = _batch_tiling(b)
    x_p = jnp.pad(x, ((0, b_pad - b), (0, 0)))      # batch-dim pad only; stays f32

    out_pad = _round_up(DIMS[-1], LANE)             # 128 -> lane-dense output stores
    grid = (b_pad // tile,)

    in_specs = [pl.BlockSpec((tile, IN_F), lambda i: (i, 0))]
    flops = 0
    bytes_accessed = x_p.size * 4 + b_pad * out_pad * 4
    for j in range(0, len(flat_params), 2):
        w_p, b_p = flat_params[j], flat_params[j + 1]
        # Constant block index -> resident in VMEM across all grid steps (no re-DMA).
        in_specs.append(pl.BlockSpec(w_p.shape, lambda i: (0, 0)))
        in_specs.append(pl.BlockSpec(b_p.shape, lambda i: (0, 0)))
        flops += 2 * b_pad * w_p.shape[0] * w_p.shape[1]
        bytes_accessed += w_p.size * 2 + b_p.size * 4

    out = pl.pallas_call(
        _mlp_kernel,
        out_shape=jax.ShapeDtypeStruct((b_pad, out_pad), jnp.float32),
        grid_spec=pltpu.PrefetchScalarGridSpec(
            num_scalar_prefetch=0,
            grid=grid,
            in_specs=in_specs,
            out_specs=pl.BlockSpec((tile, out_pad), lambda i: (i, 0)),
        ),
        compiler_params=pltpu.CompilerParams(
            dimension_semantics=("parallel",)),
        cost_estimate=pl.CostEstimate(
            flops=flops, transcendentals=0, bytes_accessed=bytes_accessed),
    )(x_p, *flat_params)

    return out[:b, :DIMS[-1]]


def init_params(key):
    """Deterministic params (f32). Weights stored as (in, out) == torch W.T."""
    params = []
    for idx in range(len(DIMS) - 1):
        d_in, d_out = DIMS[idx], DIMS[idx + 1]
        key, kw, kb = jax.random.split(key, 3)
        bound = 1.0 / jnp.sqrt(d_in)                       # torch Linear default init
        w = jax.random.uniform(kw, (d_in, d_out), jnp.float32, -bound, bound)
        bias = jax.random.uniform(kb, (1, d_out), jnp.float32, -bound, bound)
        params.append((w, bias))
    return params


if __name__ == "__main__":
    key = jax.random.PRNGKey(0)
    k_x, k_p = jax.random.split(key)

    params = init_params(k_p)
    flat_params = prepare_params(params)          # one-time pad/cast (hoisted)
    x = jax.random.normal(k_x, (2, 1, 28, 28), jnp.float32)  # NCHW, flattened inside

    y = deep_nn_forward(x, flat_params)
    jax.block_until_ready(y)
    assert y.shape == (2, 10) and y.dtype == jnp.float32

    # Pure-JAX f32 reference check (kernel matmuls are bf16 -> loosened tolerance).
    def ref(x, params):
        h = x.reshape(-1, IN_F)
        for i, (w, bias) in enumerate(params):
            h = h @ w + bias
            if i < len(params) - 1:
                h = jnp.maximum(h, 0.0)
        return h

    y_ref = ref(x, params)
    assert jnp.allclose(y, y_ref, atol=2e-2, rtol=2e-2), \
        f"max abs err {jnp.max(jnp.abs(y - y_ref))}"

    print("KERNEL_OK")
</pallas_src>

<mosaic_0001>
module attributes {stable_mosaic.version = 11 : i64} {
  func.func @_mlp_kernel(%arg0: i32, %arg1: memref<8x784xf32, #tpu.memory_space<vmem>>, %arg2: memref<784x512xbf16, #tpu.memory_space<vmem>>, %arg3: memref<1x512xf32, #tpu.memory_space<vmem>>, %arg4: memref<512x256xbf16, #tpu.memory_space<vmem>>, %arg5: memref<1x256xf32, #tpu.memory_space<vmem>>, %arg6: memref<256x128xbf16, #tpu.memory_space<vmem>>, %arg7: memref<1x128xf32, #tpu.memory_space<vmem>>, %arg8: memref<128x128xbf16, #tpu.memory_space<vmem>>, %arg9: memref<1x128xf32, #tpu.memory_space<vmem>>, %arg10: memref<128x128xbf16, #tpu.memory_space<vmem>>, %arg11: memref<1x128xf32, #tpu.memory_space<vmem>>, %arg12: memref<8x128xf32, #tpu.memory_space<vmem>>) attributes {dimension_semantics = [#tpu.dimension_semantics<parallel>], iteration_bounds = array<i64: 1>, scalar_prefetch = 0 : i64, scratch_operands = 0 : i64, tpu.core_type = #tpu.core_type<tc>, window_params = [{transform_indices = @transform_0, window_bounds = array<i64: 8, 784>}, {pipeline_mode = #tpu.pipeline_mode<synchronous>, transform_indices = @transform_1, window_bounds = array<i64: 784, 512>}, {pipeline_mode = #tpu.pipeline_mode<synchronous>, transform_indices = @transform_2, window_bounds = array<i64: 1, 512>}, {pipeline_mode = #tpu.pipeline_mode<synchronous>, transform_indices = @transform_3, window_bounds = array<i64: 512, 256>}, {pipeline_mode = #tpu.pipeline_mode<synchronous>, transform_indices = @transform_4, window_bounds = array<i64: 1, 256>}, {pipeline_mode = #tpu.pipeline_mode<synchronous>, transform_indices = @transform_5, window_bounds = array<i64: 256, 128>}, {pipeline_mode = #tpu.pipeline_mode<synchronous>, transform_indices = @transform_6, window_bounds = array<i64: 1, 128>}, {pipeline_mode = #tpu.pipeline_mode<synchronous>, transform_indices = @transform_7, window_bounds = array<i64: 128, 128>}, {pipeline_mode = #tpu.pipeline_mode<synchronous>, transform_indices = @transform_8, window_bounds = array<i64: 1, 128>}, {pipeline_mode = #tpu.pipeline_mode<synchronous>, transform_indices = @transform_9, window_bounds = array<i64: 128, 128>}, {pipeline_mode = #tpu.pipeline_mode<synchronous>, transform_indices = @transform_10, window_bounds = array<i64: 1, 128>}, {transform_indices = @transform_11, window_bounds = array<i64: 8, 128>}]} {
    %c0 = arith.constant 0 : index
    %c0_0 = arith.constant 0 : index
    %0 = vector.load %arg1[%c0, %c0_0] : memref<8x784xf32, #tpu.memory_space<vmem>>, vector<8x784xf32>
    %1 = arith.truncf %0 : vector<8x784xf32> to vector<8x784xbf16>
    %c0_1 = arith.constant 0 : index
    %c0_2 = arith.constant 0 : index
    %2 = vector.load %arg2[%c0_1, %c0_2] : memref<784x512xbf16, #tpu.memory_space<vmem>>, vector<784x512xbf16>
    %cst = arith.constant dense<0.000000e+00> : vector<8x512xf32>
    %3 = tpu.matmul %1, %2, %cst {dimension_numbers = #tpu.dot_dimension_numbers<[1], [0], [0], [1], [0, 0, 1, 1], [], []>} : vector<8x784xbf16>, vector<784x512xbf16>, vector<8x512xf32> -> vector<8x512xf32>
    %c0_3 = arith.constant 0 : index
    %c0_4 = arith.constant 0 : index
    %4 = vector.load %arg3[%c0_3, %c0_4] : memref<1x512xf32, #tpu.memory_space<vmem>>, vector<1x512xf32>
    %5 = vector.broadcast %4 : vector<1x512xf32> to vector<8x512xf32>
    %6 = arith.addf %3, %5 : vector<8x512xf32>
    %cst_5 = arith.constant 0.000000e+00 : f32
    %7 = vector.broadcast %cst_5 : f32 to vector<8x512xf32>
    %8 = arith.maximumf %6, %7 : vector<8x512xf32>
    %9 = arith.truncf %8 : vector<8x512xf32> to vector<8x512xbf16>
    %c0_6 = arith.constant 0 : index
    %c0_7 = arith.constant 0 : index
    %10 = vector.load %arg4[%c0_6, %c0_7] : memref<512x256xbf16, #tpu.memory_space<vmem>>, vector<512x256xbf16>
    %cst_8 = arith.constant dense<0.000000e+00> : vector<8x256xf32>
    %11 = tpu.matmul %9, %10, %cst_8 {dimension_numbers = #tpu.dot_dimension_numbers<[1], [0], [0], [1], [0, 0, 1, 1], [], []>} : vector<8x512xbf16>, vector<512x256xbf16>, vector<8x256xf32> -> vector<8x256xf32>
    %c0_9 = arith.constant 0 : index
    %c0_10 = arith.constant 0 : index
    %12 = vector.load %arg5[%c0_9, %c0_10] : memref<1x256xf32, #tpu.memory_space<vmem>>, vector<1x256xf32>
    %13 = vector.broadcast %12 : vector<1x256xf32> to vector<8x256xf32>
    %14 = arith.addf %11, %13 : vector<8x256xf32>
    %cst_11 = arith.constant 0.000000e+00 : f32
    %15 = vector.broadcast %cst_11 : f32 to vector<8x256xf32>
    %16 = arith.maximumf %14, %15 : vector<8x256xf32>
    %17 = arith.truncf %16 : vector<8x256xf32> to vector<8x256xbf16>
    %c0_12 = arith.constant 0 : index
    %c0_13 = arith.constant 0 : index
    %18 = vector.load %arg6[%c0_12, %c0_13] : memref<256x128xbf16, #tpu.memory_space<vmem>>, vector<256x128xbf16>
    %cst_14 = arith.constant dense<0.000000e+00> : vector<8x128xf32>
    %19 = tpu.matmul %17, %18, %cst_14 {dimension_numbers = #tpu.dot_dimension_numbers<[1], [0], [0], [1], [0, 0, 1, 1], [], []>} : vector<8x256xbf16>, vector<256x128xbf16>, vector<8x128xf32> -> vector<8x128xf32>
    %c0_15 = arith.constant 0 : index
    %c0_16 = arith.constant 0 : index
    %20 = vector.load %arg7[%c0_15, %c0_16] : memref<1x128xf32, #tpu.memory_space<vmem>>, vector<1x128xf32>
    %21 = vector.broadcast %20 : vector<1x128xf32> to vector<8x128xf32>
    %22 = arith.addf %19, %21 : vector<8x128xf32>
    %cst_17 = arith.constant 0.000000e+00 : f32
    %23 = vector.broadcast %cst_17 : f32 to vector<8x128xf32>
    %24 = arith.maximumf %22, %23 : vector<8x128xf32>
    %25 = arith.truncf %24 : vector<8x128xf32> to vector<8x128xbf16>
    %c0_18 = arith.constant 0 : index
    %c0_19 = arith.constant 0 : index
    %26 = vector.load %arg8[%c0_18, %c0_19] : memref<128x128xbf16, #tpu.memory_space<vmem>>, vector<128x128xbf16>
    %cst_20 = arith.constant dense<0.000000e+00> : vector<8x128xf32>
    %27 = tpu.matmul %25, %26, %cst_20 {dimension_numbers = #tpu.dot_dimension_numbers<[1], [0], [0], [1], [0, 0, 1, 1], [], []>} : vector<8x128xbf16>, vector<128x128xbf16>, vector<8x128xf32> -> vector<8x128xf32>
    %c0_21 = arith.constant 0 : index
    %c0_22 = arith.constant 0 : index
    %28 = vector.load %arg9[%c0_21, %c0_22] : memref<1x128xf32, #tpu.memory_space<vmem>>, vector<1x128xf32>
    %29 = vector.broadcast %28 : vector<1x128xf32> to vector<8x128xf32>
    %30 = arith.addf %27, %29 : vector<8x128xf32>
    %cst_23 = arith.constant 0.000000e+00 : f32
    %31 = vector.broadcast %cst_23 : f32 to vector<8x128xf32>
    %32 = arith.maximumf %30, %31 : vector<8x128xf32>
    %33 = arith.truncf %32 : vector<8x128xf32> to vector<8x128xbf16>
    %c0_24 = arith.constant 0 : index
    %c0_25 = arith.constant 0 : index
    %34 = vector.load %arg10[%c0_24, %c0_25] : memref<128x128xbf16, #tpu.memory_space<vmem>>, vector<128x128xbf16>
    %cst_26 = arith.constant dense<0.000000e+00> : vector<8x128xf32>
    %35 = tpu.matmul %33, %34, %cst_26 {dimension_numbers = #tpu.dot_dimension_numbers<[1], [0], [0], [1], [0, 0, 1, 1], [], []>} : vector<8x128xbf16>, vector<128x128xbf16>, vector<8x128xf32> -> vector<8x128xf32>
    %c0_27 = arith.constant 0 : index
    %c0_28 = arith.constant 0 : index
    %36 = vector.load %arg11[%c0_27, %c0_28] : memref<1x128xf32, #tpu.memory_space<vmem>>, vector<1x128xf32>
    %37 = vector.broadcast %36 : vector<1x128xf32> to vector<8x128xf32>
    %38 = arith.addf %35, %37 : vector<8x128xf32>
    %c0_29 = arith.constant 0 : index
    %c0_30 = arith.constant 0 : index
    %39 = vector.load %arg12[%c0_29, %c0_30] : memref<8x128xf32, #tpu.memory_space<vmem>>, vector<8x128xf32>
    tpu.vector_store %arg12[%c0_29, %c0_30], %38 {strides = array<i32>} : memref<8x128xf32, #tpu.memory_space<vmem>>, vector<8x128xf32>,
    return
  }
  func.func @transform_0(%arg0: i32) -> (i32, i32) {
    %c0_i32 = arith.constant 0 : i32
    %c0_i32_0 = arith.constant 0 : i32
    return %arg0, %c0_i32 : i32, i32
  }
  func.func @transform_1(%arg0: i32) -> (i32, i32) {
    %c0_i32 = arith.constant 0 : i32
    %c0_i32_0 = arith.constant 0 : i32
    %c0_i32_1 = arith.constant 0 : i32
    return %c0_i32, %c0_i32_0 : i32, i32
  }
  func.func @transform_2(%arg0: i32) -> (i32, i32) {
    %c0_i32 = arith.constant 0 : i32
    %c0_i32_0 = arith.constant 0 : i32
    %c0_i32_1 = arith.constant 0 : i32
    return %c0_i32, %c0_i32_0 : i32, i32
  }
  func.func @transform_3(%arg0: i32) -> (i32, i32) {
    %c0_i32 = arith.constant 0 : i32
    %c0_i32_0 = arith.constant 0 : i32
    %c0_i32_1 = arith.constant 0 : i32
    return %c0_i32, %c0_i32_0 : i32, i32
  }
  func.func @transform_4(%arg0: i32) -> (i32, i32) {
    %c0_i32 = arith.constant 0 : i32
    %c0_i32_0 = arith.constant 0 : i32
    %c0_i32_1 = arith.constant 0 : i32
    return %c0_i32, %c0_i32_0 : i32, i32
  }
  func.func @transform_5(%arg0: i32) -> (i32, i32) {
    %c0_i32 = arith.constant 0 : i32
    %c0_i32_0 = arith.constant 0 : i32
    %c0_i32_1 = arith.constant 0 : i32
    return %c0_i32, %c0_i32_0 : i32, i32
  }
  func.func @transform_6(%arg0: i32) -> (i32, i32) {
    %c0_i32 = arith.constant 0 : i32
    %c0_i32_0 = arith.constant 0 : i32
    %c0_i32_1 = arith.constant 0 : i32
    return %c0_i32, %c0_i32_0 : i32, i32
  }
  func.func @transform_7(%arg0: i32) -> (i32, i32) {
    %c0_i32 = arith.constant 0 : i32
    %c0_i32_0 = arith.constant 0 : i32
    %c0_i32_1 = arith.constant 0 : i32
    return %c0_i32, %c0_i32_0 : i32, i32
  }
  func.func @transform_8(%arg0: i32) -> (i32, i32) {
    %c0_i32 = arith.constant 0 : i32
    %c0_i32_0 = arith.constant 0 : i32
    %c0_i32_1 = arith.constant 0 : i32
    return %c0_i32, %c0_i32_0 : i32, i32
  }
  func.func @transform_9(%arg0: i32) -> (i32, i32) {
    %c0_i32 = arith.constant 0 : i32
    %c0_i32_0 = arith.constant 0 : i32
    %c0_i32_1 = arith.constant 0 : i32
    return %c0_i32, %c0_i32_0 : i32, i32
  }
  func.func @transform_10(%arg0: i32) -> (i32, i32) {
    %c0_i32 = arith.constant 0 : i32
    %c0_i32_0 = arith.constant 0 : i32
    %c0_i32_1 = arith.constant 0 : i32
    return %c0_i32, %c0_i32_0 : i32, i32
  }
  func.func @transform_11(%arg0: i32) -> (i32, i32) {
    %c0_i32 = arith.constant 0 : i32
    %c0_i32_0 = arith.constant 0 : i32
    return %arg0, %c0_i32 : i32, i32
  }
}

</mosaic_0001>

<llo_original>
// kernel: deep_nn_forward.1
$region0: #{deep_nn_forward.1}
  #allocation0 [shape = 'u32[]', space=smem, size = 0x4, offset = 0x4, fixed_abs, tag = 'smem constant byte address 0x4 - core index']
  #allocation1 [shape = 'u32[144,128]{1,0:T(1,128)}', space=vmem, size = 0x12000, scoped, tag = 'internal scratch']
  %s0 = inlined_call_operand.vmem [shape: f32[8,784], index: 0, kind: input, shape index: {}]
  %s1 = inlined_call_operand.hbm [shape: bf16[784,512], index: 1, kind: input, shape index: {}]
  %s2 = inlined_call_operand.vmem [shape: f32[1,512], index: 2, kind: input, shape index: {}]
  %s3 = inlined_call_operand.hbm [shape: bf16[512,256], index: 3, kind: input, shape index: {}]
  %s4 = inlined_call_operand.vmem [shape: f32[1,256], index: 4, kind: input, shape index: {}]
  %s5 = inlined_call_operand.vmem [shape: bf16[256,128], index: 5, kind: input, shape index: {}]
  %s6 = inlined_call_operand.vmem [shape: f32[1,128], index: 6, kind: input, shape index: {}]
  %s7 = inlined_call_operand.vmem [shape: bf16[128,128], index: 7, kind: input, shape index: {}]
  %s8 = inlined_call_operand.vmem [shape: f32[1,128], index: 8, kind: input, shape index: {}]
  %s9 = inlined_call_operand.vmem [shape: bf16[128,128], index: 9, kind: input, shape index: {}]
  %s10 = inlined_call_operand.vmem [shape: f32[1,128], index: 10, kind: input, shape index: {}]
  %s11 = inlined_call_operand.vmem [shape: f32[8,128], index: 11, kind: output, shape index: {}]
  %s12 = sld [smem:[#allocation0]]
  $region62: #{deep_nn_forward.1} parent=0
    _
  %s14 = ssub.s32 1, %s12
  %s15 = scalar_select 0, %s14, %s12
  $region1: #{deep_nn_forward.1} parent=0
    #allocation2 [shape = 'u8[802816]{0}', space=vmem, size = 0xc4000, scoped, tag = 'input window, operand 1, single buffered']
    #allocation3 [shape = 's32[1]{0}', space=sflag, size = 0x4, scoped, tag = 'scoped memory for deep_nn_forward.1']
    #allocation4 [shape = 'u8[262144]{0}', space=vmem, size = 0x40000, scoped, tag = 'input window, operand 3, single buffered']
    #allocation5 [shape = 's32[1]{0}', space=sflag, size = 0x4, scoped, tag = 'scoped memory for deep_nn_forward.1']
    %16 = vsyncpa [#allocation3], 0
    %17 = vsyncpa [#allocation5], 0
    // Predicated region
    $region2: #{deep_nn_forward.1} parent=1 // pred_check
      _
    $region3: #{deep_nn_forward.1} parent=1 // pred_check_branch
      %19 = sbr.rel (0) target = $region5
    $region4: #{deep_nn_forward.1} parent=1 // pred_region
      _
    $region5: #{deep_nn_forward.1} parent=1 // pred_fallthru
      _
    // Predicated region
    $region6: #{deep_nn_forward.1} parent=1 // pred_check
      _
    $region7: #{deep_nn_forward.1} parent=1 // pred_check_branch
      %21 = sbr.rel (0) target = $region9
    $region8: #{deep_nn_forward.1} parent=1 // pred_region
      %s23 = ssub.s32 25088, 25088
      %24 = vsyncadd [#allocation3], %s23
      %s25 = sshll.u32 [#allocation2], 4
      %s26 = int_to_ptr.vmem [resolvable:$true] %s25
      %31 = dma.hbm_to_vmem [thread:$0]  %s1, 25088, %s26, [#allocation3], 256, 256, 16
    $region9: #{deep_nn_forward.1} parent=1 // pred_fallthru
      _
    // Predicated region
    $region10: #{deep_nn_forward.1} parent=1 // pred_check
      _
    $region11: #{deep_nn_forward.1} parent=1 // pred_check_branch
      %33 = sbr.rel (0) target = $region13
    $region12: #{deep_nn_forward.1} parent=1 // pred_region
      _
    $region13: #{deep_nn_forward.1} parent=1 // pred_fallthru
      _
    // Predicated region
    $region14: #{deep_nn_forward.1} parent=1 // pred_check
      _
    $region15: #{deep_nn_forward.1} parent=1 // pred_check_branch
      %35 = sbr.rel (0) target = $region17
    $region16: #{deep_nn_forward.1} parent=1 // pred_region
      %s37 = ssub.s32 8192, 8192
      %38 = vsyncadd [#allocation5], %s37
      %s39 = sshll.u32 [#allocation4], 4
      %s40 = int_to_ptr.vmem [resolvable:$true] %s39
      %45 = dma.hbm_to_vmem [thread:$0]  %s3, 8192, %s40, [#allocation5], 128, 128, 8
    $region17: #{deep_nn_forward.1} parent=1 // pred_fallthru
      _
    // Predicated region
    $region18: #{deep_nn_forward.1} parent=1 // pred_check
      _
    $region19: #{deep_nn_forward.1} parent=1 // pred_check_branch
      %47 = sbr.rel (0) target = $region21
    $region20: #{deep_nn_forward.1} parent=1 // pred_region
      _
    $region21: #{deep_nn_forward.1} parent=1 // pred_fallthru
      _
    // Predicated region
    $region22: #{deep_nn_forward.1} parent=1 // pred_check
      _
    $region23: #{deep_nn_forward.1} parent=1 // pred_check_branch
      %49 = sbr.rel (0) target = $region25
    $region24: #{deep_nn_forward.1} parent=1 // pred_region
      _
    $region25: #{deep_nn_forward.1} parent=1 // pred_fallthru
      _
    // Predicated region
    $region26: #{deep_nn_forward.1} parent=1 // pred_check
      _
    $region27: #{deep_nn_forward.1} parent=1 // pred_check_branch
      %51 = sbr.rel (0) target = $region29
    $region28: #{deep_nn_forward.1} parent=1 // pred_region
      _
    $region29: #{deep_nn_forward.1} parent=1 // pred_fallthru
      _
    // Predicated region
    $region30: #{deep_nn_forward.1} parent=1 // pred_check
      _
    $region31: #{deep_nn_forward.1} parent=1 // pred_check_branch
      %53 = sbr.rel (0) target = $region33
    $region32: #{deep_nn_forward.1} parent=1 // pred_region
      _
    $region33: #{deep_nn_forward.1} parent=1 // pred_fallthru
      _
    // Predicated region
    $region34: #{deep_nn_forward.1} parent=1 // pred_check
      _
    $region35: #{deep_nn_forward.1} parent=1 // pred_check_branch
      %55 = sbr.rel (0) target = $region37
    $region36: #{deep_nn_forward.1} parent=1 // pred_region
      _
    $region37: #{deep_nn_forward.1} parent=1 // pred_fallthru
      _
    // Predicated region
    $region38: #{deep_nn_forward.1} parent=1 // pred_check
      _
    $region39: #{deep_nn_forward.1} parent=1 // pred_check_branch
      %57 = sbr.rel (0) target = $region41
    $region40: #{deep_nn_forward.1} parent=1 // pred_region
      _
    $region41: #{deep_nn_forward.1} parent=1 // pred_fallthru
      _
    // Predicated region
    $region42: #{deep_nn_forward.1} parent=1 // pred_check
      _
    $region43: #{deep_nn_forward.1} parent=1 // pred_check_branch
      %59 = sbr.rel (0) target = $region45
    $region44: #{deep_nn_forward.1} parent=1 // pred_region
      _
    $region45: #{deep_nn_forward.1} parent=1 // pred_fallthru
      _
    // Predicated region
    $region46: #{deep_nn_forward.1} parent=1 // pred_check
      _
    $region47: #{deep_nn_forward.1} parent=1 // pred_check_branch
      %61 = sbr.rel (0) target = $region49
    $region48: #{deep_nn_forward.1} parent=1 // pred_region
      %62 = dma.done [#allocation3], 25088
    $region49: #{deep_nn_forward.1} parent=1 // pred_fallthru
      _
    // Predicated region
    $region50: #{deep_nn_forward.1} parent=1 // pred_check
      _
    $region51: #{deep_nn_forward.1} parent=1 // pred_check_branch
      %64 = sbr.rel (0) target = $region53
    $region52: #{deep_nn_forward.1} parent=1 // pred_region
      %65 = dma.done [#allocation5], 8192
    $region53: #{deep_nn_forward.1} parent=1 // pred_fallthru
      _
    %v67 = vld [vmem:[%s0] sm:$0xff]
    %v68 = vld [vmem:[%s0 + $0x8] sm:$0xff]
    %v69 = vld [vmem:[%s0 + $0x10] sm:$0xff]
    %v70 = vld [vmem:[%s0 + $0x18] sm:$0xff]
    %v71 = vld [vmem:[%s0 + $0x20] sm:$0xff]
    %v72 = vld [vmem:[%s0 + $0x28] sm:$0xff]
    %v73 = vld [vmem:[%s0 + $0x30] sm:$0xff]
    %v74 = vpack.c.bf16 %v67, %v67
    %v75 = vpack.c.bf16 %v68, %v68
    %v76 = vpack.c.bf16 %v69, %v69
    %v77 = vpack.c.bf16 %v70, %v70
    %v78 = vpack.c.bf16 %v71, %v71
    %v79 = vpack.c.bf16 %v72, %v72
    %v80 = vpack.c.bf16 %v73, %v73
    %v81 = vld [vmem:[#allocation2] sm:$0xff]
    %v82 = vld [vmem:[#allocation2 + $0x8] sm:$0xff]
    %v83 = vld [vmem:[#allocation2 + $0x10] sm:$0xff]
    %v84 = vld [vmem:[#allocation2 + $0x18] sm:$0xff]
    %v85 = vld [vmem:[#allocation2 + $0x20] sm:$0xff]
    %v86 = vld [vmem:[#allocation2 + $0x28] sm:$0xff]
    %v87 = vld [vmem:[#allocation2 + $0x30] sm:$0xff]
    %v88 = vld [vmem:[#allocation2 + $0x38] sm:$0xff]
    %v89 = vld [vmem:[#allocation2 + $0x40] sm:$0xff]
    %v90 = vld [vmem:[#allocation2 + $0x48] sm:$0xff]
    %v91 = vld [vmem:[#allocation2 + $0x50] sm:$0xff]
    %v92 = vld [vmem:[#allocation2 + $0x58] sm:$0xff]
    %v93 = vld [vmem:[#allocation2 + $0x60] sm:$0xff]
    %v94 = vld [vmem:[#allocation2 + $0x68] sm:$0xff]
    %v95 = vld [vmem:[#allocation2 + $0x70] sm:$0xff]
    %v96 = vld [vmem:[#allocation2 + $0x78] sm:$0xff]
    %v97 = vld [vmem:[#allocation2 + $0x80] sm:$0xff]
    %v98 = vld [vmem:[#allocation2 + $0x88] sm:$0xff]
    %v99 = vld [vmem:[#allocation2 + $0x90] sm:$0xff]
    %v100 = vld [vmem:[#allocation2 + $0x98] sm:$0xff]
    %v101 = vld [vmem:[#allocation2 + $0xa0] sm:$0xff]
    %v102 = vld [vmem:[#allocation2 + $0xa8] sm:$0xff]
    %v103 = vld [vmem:[#allocation2 + $0xb0] sm:$0xff]
    %v104 = vld [vmem:[#allocation2 + $0xb8] sm:$0xff]
    %v105 = vld [vmem:[#allocation2 + $0xc0] sm:$0xff]
    %v106 = vld [vmem:[#allocation2 + $0xc8] sm:$0xff]
    %v107 = vld [vmem:[#allocation2 + $0xd0] sm:$0xff]
    %v108 = vld [vmem:[#allocation2 + $0xd8] sm:$0xff]
    %v109 = vld [vmem:[#allocation2 + $0xe0] sm:$0xff]
    %v110 = vld [vmem:[#allocation2 + $0xe8] sm:$0xff]
    %v111 = vld [vmem:[#allocation2 + $0xf0] sm:$0xff]
    %v112 = vld [vmem:[#allocation2 + $0xf8] sm:$0xff]
    %v113 = vld [vmem:[#allocation2 + $0x100] sm:$0xff]
    %v114 = vld [vmem:[#allocation2 + $0x108] sm:$0xff]
    %v115 = vld [vmem:[#allocation2 + $0x110] sm:$0xff]
    %v116 = vld [vmem:[#allocation2 + $0x118] sm:$0xff]
    %v117 = vld [vmem:[#allocation2 + $0x120] sm:$0xff]
    %v118 = vld [vmem:[#allocation2 + $0x128] sm:$0xff]
    %v119 = vld [vmem:[#allocation2 + $0x130] sm:$0xff]
    %v120 = vld [vmem:[#allocation2 + $0x138] sm:$0xff]
    %v121 = vld [vmem:[#allocation2 + $0x140] sm:$0xff]
    %v122 = vld [vmem:[#allocation2 + $0x148] sm:$0xff]
    %v123 = vld [vmem:[#allocation2 + $0x150] sm:$0xff]
    %v124 = vld [vmem:[#allocation2 + $0x158] sm:$0xff]
    %v125 = vld [vmem:[#allocation2 + $0x160] sm:$0xff]
    %v126 = vld [vmem:[#allocation2 + $0x168] sm:$0xff]
    %v127 = vld [vmem:[#allocation2 + $0x170] sm:$0xff]
    %v128 = vld [vmem:[#allocation2 + $0x178] sm:$0xff]
    %v129 = vld [vmem:[#allocation2 + $0x180] sm:$0xff]
    %v130 = vld [vmem:[#allocation2 + $0x188] sm:$0xff]
    %v131 = vld [vmem:[#allocation2 + $0x190] sm:$0xff]
    %v132 = vld [vmem:[#allocation2 + $0x198] sm:$0xff]
    %v133 = vld [vmem:[#allocation2 + $0x1a0] sm:$0xff]
    %v134 = vld [vmem:[#allocation2 + $0x1a8] sm:$0xff]
    %v135 = vld [vmem:[#allocation2 + $0x1b0] sm:$0xff]
    %v136 = vld [vmem:[#allocation2 + $0x1b8] sm:$0xff]
    %v137 = vld [vmem:[#allocation2 + $0x1c0] sm:$0xff]
    %v138 = vld [vmem:[#allocation2 + $0x1c8] sm:$0xff]
    %v139 = vld [vmem:[#allocation2 + $0x1d0] sm:$0xff]
    %v140 = vld [vmem:[#allocation2 + $0x1d8] sm:$0xff]
    %v141 = vld [vmem:[#allocation2 + $0x1e0] sm:$0xff]
    %v142 = vld [vmem:[#allocation2 + $0x1e8] sm:$0xff]
    %v143 = vld [vmem:[#allocation2 + $0x1f0] sm:$0xff]
    %v144 = vld [vmem:[#allocation2 + $0x1f8] sm:$0xff]
    %v145 = vld [vmem:[#allocation2 + $0x200] sm:$0xff]
    %v146 = vld [vmem:[#allocation2 + $0x208] sm:$0xff]
    %v147 = vld [vmem:[#allocation2 + $0x210] sm:$0xff]
    %v148 = vld [vmem:[#allocation2 + $0x218] sm:$0xff]
    %v149 = vld [vmem:[#allocation2 + $0x220] sm:$0xff]
    %v150 = vld [vmem:[#allocation2 + $0x228] sm:$0xff]
    %v151 = vld [vmem:[#allocation2 + $0x230] sm:$0xff]
    %v152 = vld [vmem:[#allocation2 + $0x238] sm:$0xff]
    %v153 = vld [vmem:[#allocation2 + $0x240] sm:$0xff]
    %v154 = vld [vmem:[#allocation2 + $0x248] sm:$0xff]
    %v155 = vld [vmem:[#allocation2 + $0x250] sm:$0xff]
    %v156 = vld [vmem:[#allocation2 + $0x258] sm:$0xff]
    %v157 = vld [vmem:[#allocation2 + $0x260] sm:$0xff]
    %v158 = vld [vmem:[#allocation2 + $0x268] sm:$0xff]
    %v159 = vld [vmem:[#allocation2 + $0x270] sm:$0xff]
    %v160 = vld [vmem:[#allocation2 + $0x278] sm:$0xff]
    %v161 = vld [vmem:[#allocation2 + $0x280] sm:$0xff]
    %v162 = vld [vmem:[#allocation2 + $0x288] sm:$0xff]
    %v163 = vld [vmem:[#allocation2 + $0x290] sm:$0xff]
    %v164 = vld [vmem:[#allocation2 + $0x298] sm:$0xff]
    %v165 = vld [vmem:[#allocation2 + $0x2a0] sm:$0xff]
    %v166 = vld [vmem:[#allocation2 + $0x2a8] sm:$0xff]
    %v167 = vld [vmem:[#allocation2 + $0x2b0] sm:$0xff]
    %v168 = vld [vmem:[#allocation2 + $0x2b8] sm:$0xff]
    %v169 = vld [vmem:[#allocation2 + $0x2c0] sm:$0xff]
    %v170 = vld [vmem:[#allocation2 + $0x2c8] sm:$0xff]
    %v171 = vld [vmem:[#allocation2 + $0x2d0] sm:$0xff]
    %v172 = vld [vmem:[#allocation2 + $0x2d8] sm:$0xff]
    %v173 = vld [vmem:[#allocation2 + $0x2e0] sm:$0xff]
    %v174 = vld [vmem:[#allocation2 + $0x2e8] sm:$0xff]
    %v175 = vld [vmem:[#allocation2 + $0x2f0] sm:$0xff]
    %v176 = vld [vmem:[#allocation2 + $0x2f8] sm:$0xff]
    %v177 = vld [vmem:[#allocation2 + $0x300] sm:$0xff]
    %v178 = vld [vmem:[#allocation2 + $0x308] sm:$0xff]
    %v179 = vld [vmem:[#allocation2 + $0x310] sm:$0xff]
    %v180 = vld [vmem:[#allocation2 + $0x318] sm:$0xff]
    %v181 = vld [vmem:[#allocation2 + $0x320] sm:$0xff]
    %v182 = vld [vmem:[#allocation2 + $0x328] sm:$0xff]
    %v183 = vld [vmem:[#allocation2 + $0x330] sm:$0xff]
    %v184 = vld [vmem:[#allocation2 + $0x338] sm:$0xff]
    %v185 = vld [vmem:[#allocation2 + $0x340] sm:$0xff]
    %v186 = vld [vmem:[#allocation2 + $0x348] sm:$0xff]
    %v187 = vld [vmem:[#allocation2 + $0x350] sm:$0xff]
    %v188 = vld [vmem:[#allocation2 + $0x358] sm:$0xff]
    %v189 = vld [vmem:[#allocation2 + $0x360] sm:$0xff]
    %v190 = vld [vmem:[#allocation2 + $0x368] sm:$0xff]
    %v191 = vld [vmem:[#allocation2 + $0x370] sm:$0xff]
    %v192 = vld [vmem:[#allocation2 + $0x378] sm:$0xff]
    %v193 = vld [vmem:[#allocation2 + $0x380] sm:$0xff]
    %v194 = vld [vmem:[#allocation2 + $0x388] sm:$0xff]
    %v195 = vld [vmem:[#allocation2 + $0x390] sm:$0xff]
    %v196 = vld [vmem:[#allocation2 + $0x398] sm:$0xff]
    %v197 = vld [vmem:[#allocation2 + $0x3a0] sm:$0xff]
    %v198 = vld [vmem:[#allocation2 + $0x3a8] sm:$0xff]
    %v199 = vld [vmem:[#allocation2 + $0x3b0] sm:$0xff]
    %v200 = vld [vmem:[#allocation2 + $0x3b8] sm:$0xff]
    %v201 = vld [vmem:[#allocation2 + $0x3c0] sm:$0xff]
    %v202 = vld [vmem:[#allocation2 + $0x3c8] sm:$0xff]
    %v203 = vld [vmem:[#allocation2 + $0x3d0] sm:$0xff]
    %v204 = vld [vmem:[#allocation2 + $0x3d8] sm:$0xff]
    %v205 = vld [vmem:[#allocation2 + $0x3e0] sm:$0xff]
    %v206 = vld [vmem:[#allocation2 + $0x3e8] sm:$0xff]
    %v207 = vld [vmem:[#allocation2 + $0x3f0] sm:$0xff]
    %v208 = vld [vmem:[#allocation2 + $0x3f8] sm:$0xff]
    %v209 = vld [vmem:[#allocation2 + $0x400] sm:$0xff]
    %v210 = vld [vmem:[#allocation2 + $0x408] sm:$0xff]
    %v211 = vld [vmem:[#allocation2 + $0x410] sm:$0xff]
    %v212 = vld [vmem:[#allocation2 + $0x418] sm:$0xff]
    %v213 = vld [vmem:[#allocation2 + $0x420] sm:$0xff]
    %v214 = vld [vmem:[#allocation2 + $0x428] sm:$0xff]
    %v215 = vld [vmem:[#allocation2 + $0x430] sm:$0xff]
    %v216 = vld [vmem:[#allocation2 + $0x438] sm:$0xff]
    %v217 = vld [vmem:[#allocation2 + $0x440] sm:$0xff]
    %v218 = vld [vmem:[#allocation2 + $0x448] sm:$0xff]
    %v219 = vld [vmem:[#allocation2 + $0x450] sm:$0xff]
    %v220 = vld [vmem:[#allocation2 + $0x458] sm:$0xff]
    %v221 = vld [vmem:[#allocation2 + $0x460] sm:$0xff]
    %v222 = vld [vmem:[#allocation2 + $0x468] sm:$0xff]
    %v223 = vld [vmem:[#allocation2 + $0x470] sm:$0xff]
    %v224 = vld [vmem:[#allocation2 + $0x478] sm:$0xff]
    %v225 = vld [vmem:[#allocation2 + $0x480] sm:$0xff]
    %v226 = vld [vmem:[#allocation2 + $0x488] sm:$0xff]
    %v227 = vld [vmem:[#allocation2 + $0x490] sm:$0xff]
    %v228 = vld [vmem:[#allocation2 + $0x498] sm:$0xff]
    %v229 = vld [vmem:[#allocation2 + $0x4a0] sm:$0xff]
    %v230 = vld [vmem:[#allocation2 + $0x4a8] sm:$0xff]
    %v231 = vld [vmem:[#allocation2 + $0x4b0] sm:$0xff]
    %v232 = vld [vmem:[#allocation2 + $0x4b8] sm:$0xff]
    %v233 = vld [vmem:[#allocation2 + $0x4c0] sm:$0xff]
    %v234 = vld [vmem:[#allocation2 + $0x4c8] sm:$0xff]
    %v235 = vld [vmem:[#allocation2 + $0x4d0] sm:$0xff]
    %v236 = vld [vmem:[#allocation2 + $0x4d8] sm:$0xff]
    %v237 = vld [vmem:[#allocation2 + $0x4e0] sm:$0xff]
    %v238 = vld [vmem:[#allocation2 + $0x4e8] sm:$0xff]
    %v239 = vld [vmem:[#allocation2 + $0x4f0] sm:$0xff]
    %v240 = vld [vmem:[#allocation2 + $0x4f8] sm:$0xff]
    %v241 = vld [vmem:[#allocation2 + $0x500] sm:$0xff]
    %v242 = vld [vmem:[#allocation2 + $0x508] sm:$0xff]
    %v243 = vld [vmem:[#allocation2 + $0x510] sm:$0xff]
    %v244 = vld [vmem:[#allocation2 + $0x518] sm:$0xff]
    %v245 = vld [vmem:[#allocation2 + $0x520] sm:$0xff]
    %v246 = vld [vmem:[#allocation2 + $0x528] sm:$0xff]
    %v247 = vld [vmem:[#allocation2 + $0x530] sm:$0xff]
    %v248 = vld [vmem:[#allocation2 + $0x538] sm:$0xff]
    %v249 = vld [vmem:[#allocation2 + $0x540] sm:$0xff]
    %v250 = vld [vmem:[#allocation2 + $0x548] sm:$0xff]
    %v251 = vld [vmem:[#allocation2 + $0x550] sm:$0xff]
    %v252 = vld [vmem:[#allocation2 + $0x558] sm:$0xff]
    %v253 = vld [vmem:[#allocation2 + $0x560] sm:$0xff]
    %v254 = vld [vmem:[#allocation2 + $0x568] sm:$0xff]
    %v255 = vld [vmem:[#allocation2 + $0x570] sm:$0xff]
    %v256 = vld [vmem:[#allocation2 + $0x578] sm:$0xff]
    %v257 = vld [vmem:[#allocation2 + $0x580] sm:$0xff]
    %v258 = vld [vmem:[#allocation2 + $0x588] sm:$0xff]
    %v259 = vld [vmem:[#allocation2 + $0x590] sm:$0xff]
    %v260 = vld [vmem:[#allocation2 + $0x598] sm:$0xff]
    %v261 = vld [vmem:[#allocation2 + $0x5a0] sm:$0xff]
    %v262 = vld [vmem:[#allocation2 + $0x5a8] sm:$0xff]
    %v263 = vld [vmem:[#allocation2 + $0x5b0] sm:$0xff]
    %v264 = vld [vmem:[#allocation2 + $0x5b8] sm:$0xff]
    %v265 = vld [vmem:[#allocation2 + $0x5c0] sm:$0xff]
    %v266 = vld [vmem:[#allocation2 + $0x5c8] sm:$0xff]
    %v267 = vld [vmem:[#allocation2 + $0x5d0] sm:$0xff]
    %v268 = vld [vmem:[#allocation2 + $0x5d8] sm:$0xff]
    %v269 = vld [vmem:[#allocation2 + $0x5e0] sm:$0xff]
    %v270 = vld [vmem:[#allocation2 + $0x5e8] sm:$0xff]
    %v271 = vld [vmem:[#allocation2 + $0x5f0] sm:$0xff]
    %v272 = vld [vmem:[#allocation2 + $0x5f8] sm:$0xff]
    %v273 = vld [vmem:[#allocation2 + $0x600] sm:$0xff]
    %v274 = vld [vmem:[#allocation2 + $0x608] sm:$0xff]
    %v275 = vld [vmem:[#allocation2 + $0x610] sm:$0xff]
    %v276 = vld [vmem:[#allocation2 + $0x618] sm:$0xff]
    %v277 = vld [vmem:[%s2] sm:$0xf]
    %v279 = vlaneseq
    %v280 = vshrl.u32 %v279, 7
    %v281 = vsub.s32 0, %v280
    %v282 = vrot.slane %v277, %v281
    %v283 = vlaneseq
    %v284 = vshrl.u32 %v283, 7
    %v285 = vsub.s32 1, %v284
    %v286 = vrot.slane %v277, %v285
    %v287 = vlaneseq
    %v288 = vshrl.u32 %v287, 7
    %v289 = vsub.s32 2, %v288
    %v290 = vrot.slane %v277, %v289
    %v291 = vlaneseq
    %v292 = vshrl.u32 %v291, 7
    %v293 = vsub.s32 3, %v292
    %v294 = vrot.slane %v277, %v293
    %v495 = vunpack.c.l.b16 %v81
    %v496 = vunpack.c.h.b16 %v81
    %v497 = vunpack.c.l.b16 %v82
    %v498 = vunpack.c.h.b16 %v82
    %v499 = vunpack.c.l.b16 %v83
    %v500 = vunpack.c.h.b16 %v83
    %v501 = vunpack.c.l.b16 %v84
    %v502 = vunpack.c.h.b16 %v84
    %v503 = vunpack.c.l.b16 %v85
    %v504 = vunpack.c.h.b16 %v85
    %v505 = vunpack.c.l.b16 %v86
    %v506 = vunpack.c.h.b16 %v86
    %v507 = vunpack.c.l.b16 %v87
    %v508 = vunpack.c.h.b16 %v87
    %v509 = vunpack.c.l.b16 %v88
    %v510 = vunpack.c.h.b16 %v88
    %v511 = vunpack.c.l.b16 %v89
    %v512 = vunpack.c.h.b16 %v89
    %v513 = vunpack.c.l.b16 %v90
    %v514 = vunpack.c.h.b16 %v90
    %v515 = vunpack.c.l.b16 %v91
    %v516 = vunpack.c.h.b16 %v91
    %v517 = vunpack.c.l.b16 %v92
    %v518 = vunpack.c.h.b16 %v92
    %v519 = vunpack.c.l.b16 %v93
    %v520 = vunpack.c.h.b16 %v93
    %v521 = vunpack.c.l.b16 %v94
    %v522 = vunpack.c.h.b16 %v94
    %v523 = vunpack.c.l.b16 %v95
    %v524 = vunpack.c.h.b16 %v95
    %v525 = vunpack.c.l.b16 %v96
    %v526 = vunpack.c.h.b16 %v96
    %v527 = vunpack.c.l.b16 %v97
    %v528 = vunpack.c.h.b16 %v97
    %v529 = vunpack.c.l.b16 %v98
    %v530 = vunpack.c.h.b16 %v98
    %v531 = vunpack.c.l.b16 %v99
    %v532 = vunpack.c.h.b16 %v99
    %v533 = vunpack.c.l.b16 %v100
    %v534 = vunpack.c.h.b16 %v100
    %v535 = vunpack.c.l.b16 %v101
    %v536 = vunpack.c.h.b16 %v101
    %v537 = vunpack.c.l.b16 %v102
    %v538 = vunpack.c.h.b16 %v102
    %v539 = vunpack.c.l.b16 %v103
    %v540 = vunpack.c.h.b16 %v103
    %v541 = vunpack.c.l.b16 %v104
    %v542 = vunpack.c.h.b16 %v104
    %v543 = vunpack.c.l.b16 %v105
    %v544 = vunpack.c.h.b16 %v105
    %v545 = vunpack.c.l.b16 %v106
    %v546 = vunpack.c.h.b16 %v106
    %v547 = vunpack.c.l.b16 %v107
    %v548 = vunpack.c.h.b16 %v107
    %v549 = vunpack.c.l.b16 %v108
    %v550 = vunpack.c.h.b16 %v108
    %v551 = vunpack.c.l.b16 %v109
    %v552 = vunpack.c.h.b16 %v109
    %v553 = vunpack.c.l.b16 %v110
    %v554 = vunpack.c.h.b16 %v110
    %v555 = vunpack.c.l.b16 %v111
    %v556 = vunpack.c.h.b16 %v111
    %v557 = vunpack.c.l.b16 %v112
    %v558 = vunpack.c.h.b16 %v112
    %v559 = vunpack.c.l.b16 %v113
    %v560 = vunpack.c.h.b16 %v113
    %v561 = vunpack.c.l.b16 %v114
    %v562 = vunpack.c.h.b16 %v114
    %v563 = vunpack.c.l.b16 %v115
    %v564 = vunpack.c.h.b16 %v115
    %v565 = vunpack.c.l.b16 %v116
    %v566 = vunpack.c.h.b16 %v116
    %v567 = vunpack.c.l.b16 %v117
    %v568 = vunpack.c.h.b16 %v117
    %v569 = vunpack.c.l.b16 %v118
    %v570 = vunpack.c.h.b16 %v118
    %v571 = vunpack.c.l.b16 %v119
    %v572 = vunpack.c.h.b16 %v119
    %v573 = vunpack.c.l.b16 %v120
    %v574 = vunpack.c.h.b16 %v120
    %v575 = vunpack.c.l.b16 %v121
    %v576 = vunpack.c.h.b16 %v121
    %v577 = vunpack.c.l.b16 %v122
    %v578 = vunpack.c.h.b16 %v122
    %v579 = vunpack.c.l.b16 %v123
    %v580 = vunpack.c.h.b16 %v123
    %v581 = vunpack.c.l.b16 %v124
    %v582 = vunpack.c.h.b16 %v124
    %v583 = vunpack.c.l.b16 %v125
    %v584 = vunpack.c.h.b16 %v125
    %v585 = vunpack.c.l.b16 %v126
    %v586 = vunpack.c.h.b16 %v126
    %v587 = vunpack.c.l.b16 %v127
    %v588 = vunpack.c.h.b16 %v127
    %v589 = vunpack.c.l.b16 %v128
    %v590 = vunpack.c.h.b16 %v128
    %v591 = vunpack.c.l.b16 %v129
    %v592 = vunpack.c.h.b16 %v129
    %v593 = vunpack.c.l.b16 %v130
    %v594 = vunpack.c.h.b16 %v130
    %v595 = vunpack.c.l.b16 %v131
    %v596 = vunpack.c.h.b16 %v131
    %v597 = vunpack.c.l.b16 %v132
    %v598 = vunpack.c.h.b16 %v132
    %v599 = vunpack.c.l.b16 %v133
    %v600 = vunpack.c.h.b16 %v133
    %v601 = vunpack.c.l.b16 %v134
    %v602 = vunpack.c.h.b16 %v134
    %v603 = vunpack.c.l.b16 %v135
    %v604 = vunpack.c.h.b16 %v135
    %v605 = vunpack.c.l.b16 %v136
    %v606 = vunpack.c.h.b16 %v136
    %v607 = vunpack.c.l.b16 %v137
    %v608 = vunpack.c.h.b16 %v137
    %v609 = vunpack.c.l.b16 %v138
    %v610 = vunpack.c.h.b16 %v138
    %v611 = vunpack.c.l.b16 %v139
    %v612 = vunpack.c.h.b16 %v139
    %v613 = vunpack.c.l.b16 %v140
    %v614 = vunpack.c.h.b16 %v140
    %v615 = vunpack.c.l.b16 %v141
    %v616 = vunpack.c.h.b16 %v141
    %v617 = vunpack.c.l.b16 %v142
    %v618 = vunpack.c.h.b16 %v142
    %v619 = vunpack.c.l.b16 %v143
    %v620 = vunpack.c.h.b16 %v143
    %v621 = vunpack.c.l.b16 %v144
    %v622 = vunpack.c.h.b16 %v144
    %v623 = vunpack.c.l.b16 %v145
    %v624 = vunpack.c.h.b16 %v145
    %v625 = vunpack.c.l.b16 %v146
    %v626 = vunpack.c.h.b16 %v146
    %v627 = vunpack.c.l.b16 %v147
    %v628 = vunpack.c.h.b16 %v147
    %v629 = vunpack.c.l.b16 %v148
    %v630 = vunpack.c.h.b16 %v148
    %v631 = vunpack.c.l.b16 %v149
    %v632 = vunpack.c.h.b16 %v149
    %v633 = vunpack.c.l.b16 %v150
    %v634 = vunpack.c.h.b16 %v150
    %v635 = vunpack.c.l.b16 %v151
    %v636 = vunpack.c.h.b16 %v151
    %v637 = vunpack.c.l.b16 %v152
    %v638 = vunpack.c.h.b16 %v152
    %v639 = vunpack.c.l.b16 %v153
    %v640 = vunpack.c.h.b16 %v153
    %v641 = vunpack.c.l.b16 %v154
    %v642 = vunpack.c.h.b16 %v154
    %v643 = vunpack.c.l.b16 %v155
    %v644 = vunpack.c.h.b16 %v155
    %v645 = vunpack.c.l.b16 %v156
    %v646 = vunpack.c.h.b16 %v156
    %v647 = vunpack.c.l.b16 %v157
    %v648 = vunpack.c.h.b16 %v157
    %v649 = vunpack.c.l.b16 %v158
    %v650 = vunpack.c.h.b16 %v158
    %v651 = vunpack.c.l.b16 %v159
    %v652 = vunpack.c.h.b16 %v159
    %v653 = vunpack.c.l.b16 %v160
    %v654 = vunpack.c.h.b16 %v160
    %v655 = vunpack.c.l.b16 %v161
    %v656 = vunpack.c.h.b16 %v161
    %v657 = vunpack.c.l.b16 %v162
    %v658 = vunpack.c.h.b16 %v162
    %v659 = vunpack.c.l.b16 %v163
    %v660 = vunpack.c.h.b16 %v163
    %v661 = vunpack.c.l.b16 %v164
    %v662 = vunpack.c.h.b16 %v164
    %v663 = vunpack.c.l.b16 %v165
    %v664 = vunpack.c.h.b16 %v165
    %v665 = vunpack.c.l.b16 %v166
    %v666 = vunpack.c.h.b16 %v166
    %v667 = vunpack.c.l.b16 %v167
    %v668 = vunpack.c.h.b16 %v167
    %v669 = vunpack.c.l.b16 %v168
    %v670 = vunpack.c.h.b16 %v168
    %v671 = vunpack.c.l.b16 %v169
    %v672 = vunpack.c.h.b16 %v169
    %v673 = vunpack.c.l.b16 %v170
    %v674 = vunpack.c.h.b16 %v170
    %v675 = vunpack.c.l.b16 %v171
    %v676 = vunpack.c.h.b16 %v171
    %v677 = vunpack.c.l.b16 %v172
    %v678 = vunpack.c.h.b16 %v172
    %v679 = vunpack.c.l.b16 %v173
    %v680 = vunpack.c.h.b16 %v173
    %v681 = vunpack.c.l.b16 %v174
    %v682 = vunpack.c.h.b16 %v174
    %v683 = vunpack.c.l.b16 %v175
    %v684 = vunpack.c.h.b16 %v175
    %v685 = vunpack.c.l.b16 %v176
    %v686 = vunpack.c.h.b16 %v176
    %v687 = vunpack.c.l.b16 %v177
    %v688 = vunpack.c.h.b16 %v177
    %v689 = vunpack.c.l.b16 %v178
    %v690 = vunpack.c.h.b16 %v178
    %v691 = vunpack.c.l.b16 %v179
    %v692 = vunpack.c.h.b16 %v179
    %v693 = vunpack.c.l.b16 %v180
    %v694 = vunpack.c.h.b16 %v180
    %v695 = vunpack.c.l.b16 %v181
    %v696 = vunpack.c.h.b16 %v181
    %v697 = vunpack.c.l.b16 %v182
    %v698 = vunpack.c.h.b16 %v182
    %v699 = vunpack.c.l.b16 %v183
    %v700 = vunpack.c.h.b16 %v183
    %v701 = vunpack.c.l.b16 %v184
    %v702 = vunpack.c.h.b16 %v184
    %v703 = vunpack.c.l.b16 %v185
    %v704 = vunpack.c.h.b16 %v185
    %v705 = vunpack.c.l.b16 %v186
    %v706 = vunpack.c.h.b16 %v186
    %v707 = vunpack.c.l.b16 %v187
    %v708 = vunpack.c.h.b16 %v187
    %v709 = vunpack.c.l.b16 %v188
    %v710 = vunpack.c.h.b16 %v188
    %v711 = vunpack.c.l.b16 %v189
    %v712 = vunpack.c.h.b16 %v189
    %v713 = vunpack.c.l.b16 %v190
    %v714 = vunpack.c.h.b16 %v190
    %v715 = vunpack.c.l.b16 %v191
    %v716 = vunpack.c.h.b16 %v191
    %v717 = vunpack.c.l.b16 %v192
    %v718 = vunpack.c.h.b16 %v192
    %v719 = vunpack.c.l.b16 %v193
    %v720 = vunpack.c.h.b16 %v193
    %v721 = vunpack.c.l.b16 %v194
    %v722 = vunpack.c.h.b16 %v194
    %v723 = vunpack.c.l.b16 %v195
    %v724 = vunpack.c.h.b16 %v195
    %v725 = vunpack.c.l.b16 %v196
    %v726 = vunpack.c.h.b16 %v196
    %v727 = vunpack.c.l.b16 %v197
    %v728 = vunpack.c.h.b16 %v197
    %v729 = vunpack.c.l.b16 %v198
    %v730 = vunpack.c.h.b16 %v198
    %v731 = vunpack.c.l.b16 %v199
    %v732 = vunpack.c.h.b16 %v199
    %v733 = vunpack.c.l.b16 %v200
    %v734 = vunpack.c.h.b16 %v200
    %v735 = vunpack.c.l.b16 %v201
    %v736 = vunpack.c.h.b16 %v201
    %v737 = vunpack.c.l.b16 %v202
    %v738 = vunpack.c.h.b16 %v202
    %v739 = vunpack.c.l.b16 %v203
    %v740 = vunpack.c.h.b16 %v203
    %v741 = vunpack.c.l.b16 %v204
    %v742 = vunpack.c.h.b16 %v204
    %v743 = vunpack.c.l.b16 %v205
    %v744 = vunpack.c.h.b16 %v205
    %v745 = vunpack.c.l.b16 %v206
    %v746 = vunpack.c.h.b16 %v206
    %v747 = vunpack.c.l.b16 %v207
    %v748 = vunpack.c.h.b16 %v207
    %v749 = vunpack.c.l.b16 %v208
    %v750 = vunpack.c.h.b16 %v208
    %v751 = vunpack.c.l.b16 %v209
    %v752 = vunpack.c.h.b16 %v209
    %v753 = vunpack.c.l.b16 %v210
    %v754 = vunpack.c.h.b16 %v210
    %v755 = vunpack.c.l.b16 %v211
    %v756 = vunpack.c.h.b16 %v211
    %v757 = vunpack.c.l.b16 %v212
    %v758 = vunpack.c.h.b16 %v212
    %v759 = vunpack.c.l.b16 %v213
    %v760 = vunpack.c.h.b16 %v213
    %v761 = vunpack.c.l.b16 %v214
    %v762 = vunpack.c.h.b16 %v214
    %v763 = vunpack.c.l.b16 %v215
    %v764 = vunpack.c.h.b16 %v215
    %v765 = vunpack.c.l.b16 %v216
    %v766 = vunpack.c.h.b16 %v216
    %v767 = vunpack.c.l.b16 %v217
    %v768 = vunpack.c.h.b16 %v217
    %v769 = vunpack.c.l.b16 %v218
    %v770 = vunpack.c.h.b16 %v218
    %v771 = vunpack.c.l.b16 %v219
    %v772 = vunpack.c.h.b16 %v219
    %v773 = vunpack.c.l.b16 %v220
    %v774 = vunpack.c.h.b16 %v220
    %v775 = vunpack.c.l.b16 %v221
    %v776 = vunpack.c.h.b16 %v221
    %v777 = vunpack.c.l.b16 %v222
    %v778 = vunpack.c.h.b16 %v222
    %v779 = vunpack.c.l.b16 %v223
    %v780 = vunpack.c.h.b16 %v223
    %v781 = vunpack.c.l.b16 %v224
    %v782 = vunpack.c.h.b16 %v224
    %v783 = vunpack.c.l.b16 %v225
    %v784 = vunpack.c.h.b16 %v225
    %v785 = vunpack.c.l.b16 %v226
    %v786 = vunpack.c.h.b16 %v226
    %v787 = vunpack.c.l.b16 %v227
    %v788 = vunpack.c.h.b16 %v227
    %v789 = vunpack.c.l.b16 %v228
    %v790 = vunpack.c.h.b16 %v228
    %v791 = vunpack.c.l.b16 %v229
    %v792 = vunpack.c.h.b16 %v229
    %v793 = vunpack.c.l.b16 %v230
    %v794 = vunpack.c.h.b16 %v230
    %v795 = vunpack.c.l.b16 %v231
    %v796 = vunpack.c.h.b16 %v231
    %v797 = vunpack.c.l.b16 %v232
    %v798 = vunpack.c.h.b16 %v232
    %v799 = vunpack.c.l.b16 %v233
    %v800 = vunpack.c.h.b16 %v233
    %v801 = vunpack.c.l.b16 %v234
    %v802 = vunpack.c.h.b16 %v234
    %v803 = vunpack.c.l.b16 %v235
    %v804 = vunpack.c.h.b16 %v235
    %v805 = vunpack.c.l.b16 %v236
    %v806 = vunpack.c.h.b16 %v236
    %v807 = vunpack.c.l.b16 %v237
    %v808 = vunpack.c.h.b16 %v237
    %v809 = vunpack.c.l.b16 %v238
    %v810 = vunpack.c.h.b16 %v238
    %v811 = vunpack.c.l.b16 %v239
    %v812 = vunpack.c.h.b16 %v239
    %v813 = vunpack.c.l.b16 %v240
    %v814 = vunpack.c.h.b16 %v240
    %v815 = vunpack.c.l.b16 %v241
    %v816 = vunpack.c.h.b16 %v241
    %v817 = vunpack.c.l.b16 %v242
    %v818 = vunpack.c.h.b16 %v242
    %v819 = vunpack.c.l.b16 %v243
    %v820 = vunpack.c.h.b16 %v243
    %v821 = vunpack.c.l.b16 %v244
    %v822 = vunpack.c.h.b16 %v244
    %v823 = vunpack.c.l.b16 %v245
    %v824 = vunpack.c.h.b16 %v245
    %v825 = vunpack.c.l.b16 %v246
    %v826 = vunpack.c.h.b16 %v246
    %v827 = vunpack.c.l.b16 %v247
    %v828 = vunpack.c.h.b16 %v247
    %v829 = vunpack.c.l.b16 %v248
    %v830 = vunpack.c.h.b16 %v248
    %v831 = vunpack.c.l.b16 %v249
    %v832 = vunpack.c.h.b16 %v249
    %v833 = vunpack.c.l.b16 %v250
    %v834 = vunpack.c.h.b16 %v250
    %v835 = vunpack.c.l.b16 %v251
    %v836 = vunpack.c.h.b16 %v251
    %v837 = vunpack.c.l.b16 %v252
    %v838 = vunpack.c.h.b16 %v252
    %v839 = vunpack.c.l.b16 %v253
    %v840 = vunpack.c.h.b16 %v253
    %v841 = vunpack.c.l.b16 %v254
    %v842 = vunpack.c.h.b16 %v254
    %v843 = vunpack.c.l.b16 %v255
    %v844 = vunpack.c.h.b16 %v255
    %v845 = vunpack.c.l.b16 %v256
    %v846 = vunpack.c.h.b16 %v256
    %v847 = vunpack.c.l.b16 %v257
    %v848 = vunpack.c.h.b16 %v257
    %v849 = vunpack.c.l.b16 %v258
    %v850 = vunpack.c.h.b16 %v258
    %v851 = vunpack.c.l.b16 %v259
    %v852 = vunpack.c.h.b16 %v259
    %v853 = vunpack.c.l.b16 %v260
    %v854 = vunpack.c.h.b16 %v260
    %v855 = vunpack.c.l.b16 %v261
    %v856 = vunpack.c.h.b16 %v261
    %v857 = vunpack.c.l.b16 %v262
    %v858 = vunpack.c.h.b16 %v262
    %v859 = vunpack.c.l.b16 %v263
    %v860 = vunpack.c.h.b16 %v263
    %v861 = vunpack.c.l.b16 %v264
    %v862 = vunpack.c.h.b16 %v264
    %v863 = vunpack.c.l.b16 %v265
    %v864 = vunpack.c.h.b16 %v265
    %v865 = vunpack.c.l.b16 %v266
    %v866 = vunpack.c.h.b16 %v266
    %v867 = vunpack.c.l.b16 %v267
    %v868 = vunpack.c.h.b16 %v267
    %v869 = vunpack.c.l.b16 %v268
    %v870 = vunpack.c.h.b16 %v268
    %v871 = vunpack.c.l.b16 %v269
    %v872 = vunpack.c.h.b16 %v269
    %v873 = vunpack.c.l.b16 %v270
    %v874 = vunpack.c.h.b16 %v270
    %v875 = vunpack.c.l.b16 %v271
    %v876 = vunpack.c.h.b16 %v271
    %v877 = vunpack.c.l.b16 %v272
    %v878 = vunpack.c.h.b16 %v272
    %v879 = vunpack.c.l.b16 %v273
    %v880 = vunpack.c.h.b16 %v273
    %v881 = vunpack.c.l.b16 %v274
    %v882 = vunpack.c.h.b16 %v274
    %v883 = vunpack.c.l.b16 %v275
    %v884 = vunpack.c.h.b16 %v275
    %v885 = vunpack.c.l.b16 %v276
    %v886 = vunpack.c.h.b16 %v276
    %v887 = vpack.c.b16 %v499, %v495
    %v888 = vpack.c.b16 %v500, %v496
    %v889 = vpack.c.b16 %v501, %v497
    %v890 = vpack.c.b16 %v502, %v498
    %v891 = vpack.c.b16 %v507, %v503
    %v892 = vpack.c.b16 %v508, %v504
    %v893 = vpack.c.b16 %v509, %v505
    %v894 = vpack.c.b16 %v510, %v506
    %v895 = vpack.c.b16 %v515, %v511
    %v896 = vpack.c.b16 %v516, %v512
    %v897 = vpack.c.b16 %v517, %v513
    %v898 = vpack.c.b16 %v518, %v514
    %v899 = vpack.c.b16 %v523, %v519
    %v900 = vpack.c.b16 %v524, %v520
    %v901 = vpack.c.b16 %v525, %v521
    %v902 = vpack.c.b16 %v526, %v522
    %v903 = vpack.c.b16 %v531, %v527
    %v904 = vpack.c.b16 %v532, %v528
    %v905 = vpack.c.b16 %v533, %v529
    %v906 = vpack.c.b16 %v534, %v530
    %v907 = vpack.c.b16 %v539, %v535
    %v908 = vpack.c.b16 %v540, %v536
    %v909 = vpack.c.b16 %v541, %v537
    %v910 = vpack.c.b16 %v542, %v538
    %v911 = vpack.c.b16 %v547, %v543
    %v912 = vpack.c.b16 %v548, %v544
    %v913 = vpack.c.b16 %v549, %v545
    %v914 = vpack.c.b16 %v550, %v546
    %v915 = vpack.c.b16 %v555, %v551
    %v916 = vpack.c.b16 %v556, %v552
    %v917 = vpack.c.b16 %v557, %v553
    %v918 = vpack.c.b16 %v558, %v554
    %v919 = vpack.c.b16 %v563, %v559
    %v920 = vpack.c.b16 %v564, %v560
    %v921 = vpack.c.b16 %v565, %v561
    %v922 = vpack.c.b16 %v566, %v562
    %v923 = vpack.c.b16 %v571, %v567
    %v924 = vpack.c.b16 %v572, %v568
    %v925 = vpack.c.b16 %v573, %v569
    %v926 = vpack.c.b16 %v574, %v570
    %v927 = vpack.c.b16 %v579, %v575
    %v928 = vpack.c.b16 %v580, %v576
    %v929 = vpack.c.b16 %v581, %v577
    %v930 = vpack.c.b16 %v582, %v578
    %v931 = vpack.c.b16 %v587, %v583
    %v932 = vpack.c.b16 %v588, %v584
    %v933 = vpack.c.b16 %v589, %v585
    %v934 = vpack.c.b16 %v590, %v586
    %v935 = vpack.c.b16 %v595, %v591
    %v936 = vpack.c.b16 %v596, %v592
    %v937 = vpack.c.b16 %v597, %v593
    %v938 = vpack.c.b16 %v598, %v594
    %v939 = vpack.c.b16 %v603, %v599
    %v940 = vpack.c.b16 %v604, %v600
    %v941 = vpack.c.b16 %v605, %v601
    %v942 = vpack.c.b16 %v606, %v602
    %v943 = vpack.c.b16 %v611, %v607
    %v944 = vpack.c.b16 %v612, %v608
    %v945 = vpack.c.b16 %v613, %v609
    %v946 = vpack.c.b16 %v614, %v610
    %v947 = vpack.c.b16 %v619, %v615
    %v948 = vpack.c.b16 %v620, %v616
    %v949 = vpack.c.b16 %v621, %v617
    %v950 = vpack.c.b16 %v622, %v618
    %v951 = vpack.c.b16 %v627, %v623
    %v952 = vpack.c.b16 %v628, %v624
    %v953 = vpack.c.b16 %v629, %v625
    %v954 = vpack.c.b16 %v630, %v626
    %v955 = vpack.c.b16 %v635, %v631
    %v956 = vpack.c.b16 %v636, %v632
    %v957 = vpack.c.b16 %v637, %v633
    %v958 = vpack.c.b16 %v638, %v634
    %v959 = vpack.c.b16 %v643, %v639
    %v960 = vpack.c.b16 %v644, %v640
    %v961 = vpack.c.b16 %v645, %v641
    %v962 = vpack.c.b16 %v646, %v642
    %v963 = vpack.c.b16 %v651, %v647
    %v964 = vpack.c.b16 %v652, %v648
    %v965 = vpack.c.b16 %v653, %v649
    %v966 = vpack.c.b16 %v654, %v650
    %v967 = vpack.c.b16 %v659, %v655
    %v968 = vpack.c.b16 %v660, %v656
    %v969 = vpack.c.b16 %v661, %v657
    %v970 = vpack.c.b16 %v662, %v658
    %v971 = vpack.c.b16 %v667, %v663
    %v972 = vpack.c.b16 %v668, %v664
    %v973 = vpack.c.b16 %v669, %v665
    %v974 = vpack.c.b16 %v670, %v666
    %v975 = vpack.c.b16 %v675, %v671
    %v976 = vpack.c.b16 %v676, %v672
    %v977 = vpack.c.b16 %v677, %v673
    %v978 = vpack.c.b16 %v678, %v674
    %v979 = vpack.c.b16 %v683, %v679
    %v980 = vpack.c.b16 %v684, %v680
    %v981 = vpack.c.b16 %v685, %v681
    %v982 = vpack.c.b16 %v686, %v682
    %v983 = vpack.c.b16 %v691, %v687
    %v984 = vpack.c.b16 %v692, %v688
    %v985 = vpack.c.b16 %v693, %v689
    %v986 = vpack.c.b16 %v694, %v690
    %v987 = vpack.c.b16 %v699, %v695
    %v988 = vpack.c.b16 %v700, %v696
    %v989 = vpack.c.b16 %v701, %v697
    %v990 = vpack.c.b16 %v702, %v698
    %v991 = vpack.c.b16 %v707, %v703
    %v992 = vpack.c.b16 %v708, %v704
    %v993 = vpack.c.b16 %v709, %v705
    %v994 = vpack.c.b16 %v710, %v706
    %v995 = vpack.c.b16 %v715, %v711
    %v996 = vpack.c.b16 %v716, %v712
    %v997 = vpack.c.b16 %v717, %v713
    %v998 = vpack.c.b16 %v718, %v714
    %v999 = vpack.c.b16 %v723, %v719
    %v1000 = vpack.c.b16 %v724, %v720
    %v1001 = vpack.c.b16 %v725, %v721
    %v1002 = vpack.c.b16 %v726, %v722
    %v1003 = vpack.c.b16 %v731, %v727
    %v1004 = vpack.c.b16 %v732, %v728
    %v1005 = vpack.c.b16 %v733, %v729
    %v1006 = vpack.c.b16 %v734, %v730
    %v1007 = vpack.c.b16 %v739, %v735
    %v1008 = vpack.c.b16 %v740, %v736
    %v1009 = vpack.c.b16 %v741, %v737
    %v1010 = vpack.c.b16 %v742, %v738
    %v1011 = vpack.c.b16 %v747, %v743
    %v1012 = vpack.c.b16 %v748, %v744
    %v1013 = vpack.c.b16 %v749, %v745
    %v1014 = vpack.c.b16 %v750, %v746
    %v1015 = vpack.c.b16 %v755, %v751
    %v1016 = vpack.c.b16 %v756, %v752
    %v1017 = vpack.c.b16 %v757, %v753
    %v1018 = vpack.c.b16 %v758, %v754
    %v1019 = vpack.c.b16 %v763, %v759
    %v1020 = vpack.c.b16 %v764, %v760
    %v1021 = vpack.c.b16 %v765, %v761
    %v1022 = vpack.c.b16 %v766, %v762
    %v1023 = vpack.c.b16 %v771, %v767
    %v1024 = vpack.c.b16 %v772, %v768
    %v1025 = vpack.c.b16 %v773, %v769
    %v1026 = vpack.c.b16 %v774, %v770
    %v1027 = vpack.c.b16 %v779, %v775
    %v1028 = vpack.c.b16 %v780, %v776
    %v1029 = vpack.c.b16 %v781, %v777
    %v1030 = vpack.c.b16 %v782, %v778
    %v1031 = vpack.c.b16 %v787, %v783
    %v1032 = vpack.c.b16 %v788, %v784
    %v1033 = vpack.c.b16 %v789, %v785
    %v1034 = vpack.c.b16 %v790, %v786
    %v1035 = vpack.c.b16 %v795, %v791
    %v1036 = vpack.c.b16 %v796, %v792
    %v1037 = vpack.c.b16 %v797, %v793
    %v1038 = vpack.c.b16 %v798, %v794
    %v1039 = vpack.c.b16 %v803, %v799
    %v1040 = vpack.c.b16 %v804, %v800
    %v1041 = vpack.c.b16 %v805, %v801
    %v1042 = vpack.c.b16 %v806, %v802
    %v1043 = vpack.c.b16 %v811, %v807
    %v1044 = vpack.c.b16 %v812, %v808
    %v1045 = vpack.c.b16 %v813, %v809
    %v1046 = vpack.c.b16 %v814, %v810
    %v1047 = vpack.c.b16 %v819, %v815
    %v1048 = vpack.c.b16 %v820, %v816
    %v1049 = vpack.c.b16 %v821, %v817
    %v1050 = vpack.c.b16 %v822, %v818
    %v1051 = vpack.c.b16 %v827, %v823
    %v1052 = vpack.c.b16 %v828, %v824
    %v1053 = vpack.c.b16 %v829, %v825
    %v1054 = vpack.c.b16 %v830, %v826
    %v1055 = vpack.c.b16 %v835, %v831
    %v1056 = vpack.c.b16 %v836, %v832
    %v1057 = vpack.c.b16 %v837, %v833
    %v1058 = vpack.c.b16 %v838, %v834
    %v1059 = vpack.c.b16 %v843, %v839
    %v1060 = vpack.c.b16 %v844, %v840
    %v1061 = vpack.c.b16 %v845, %v841
    %v1062 = vpack.c.b16 %v846, %v842
    %v1063 = vpack.c.b16 %v851, %v847
    %v1064 = vpack.c.b16 %v852, %v848
    %v1065 = vpack.c.b16 %v853, %v849
    %v1066 = vpack.c.b16 %v854, %v850
    %v1067 = vpack.c.b16 %v859, %v855
    %v1068 = vpack.c.b16 %v860, %v856
    %v1069 = vpack.c.b16 %v861, %v857
    %v1070 = vpack.c.b16 %v862, %v858
    %v1071 = vpack.c.b16 %v867, %v863
    %v1072 = vpack.c.b16 %v868, %v864
    %v1073 = vpack.c.b16 %v869, %v865
    %v1074 = vpack.c.b16 %v870, %v866
    %v1075 = vpack.c.b16 %v875, %v871
    %v1076 = vpack.c.b16 %v876, %v872
    %v1077 = vpack.c.b16 %v877, %v873
    %v1078 = vpack.c.b16 %v878, %v874
    %v1079 = vpack.c.b16 %v883, %v879
    %v1080 = vpack.c.b16 %v884, %v880
    %v1081 = vpack.c.b16 %v885, %v881
    %v1082 = vpack.c.b16 %v886, %v882
    %vm1279 = vcmask 130048
    %v1281 = vsel %vm1279, %v80, 0
    %1283 = vmatprep.subr.bf16.mxu0 %v916
    %1284 = vmatpush1.bf16.msra.mxu0 %v915
    %1285 = vmatprep.subr.bf16.mxu0 %v912
    %1286 = vmatpush1.bf16.msra.mxu0 %v911
    %1287 = vmatprep.subr.bf16.mxu0 %v908
    %1288 = vmatpush1.bf16.msra.mxu0 %v907
    %1289 = vmatprep.subr.bf16.mxu0 %v904
    %1290 = vmatpush1.bf16.msra.mxu0 %v903
    %1291 = vmatprep.subr.bf16.mxu0 %v900
    %1292 = vmatpush1.bf16.msra.mxu0 %v899
    %1293 = vmatprep.subr.bf16.mxu0 %v896
    %1294 = vmatpush1.bf16.msra.mxu0 %v895
    %1295 = vmatprep.subr.bf16.mxu0 %v892
    %1296 = vmatpush1.bf16.msra.mxu0 %v891
    %1297 = vmatprep.subr.bf16.mxu0 %v888
    %1298 = vmatpush1.bf16.msra.mxu0 %v887
    %1299 = vmatprep.subr.bf16.mxu0 %v948
    %1300 = vmatpush2.bf16.msra.mxu0 %v947
    %1301 = vmatprep.subr.bf16.mxu0 %v944
    %1302 = vmatpush2.bf16.msra.mxu0 %v943
    %1303 = vmatprep.subr.bf16.mxu0 %v940
    %1304 = vmatpush2.bf16.msra.mxu0 %v939
    %1305 = vmatprep.subr.bf16.mxu0 %v936
    %1306 = vmatpush2.bf16.msra.mxu0 %v935
    %1307 = vmatprep.subr.bf16.mxu0 %v932
    %1308 = vmatpush2.bf16.msra.mxu0 %v931
    %1309 = vmatprep.subr.bf16.mxu0 %v928
    %1310 = vmatpush2.bf16.msra.mxu0 %v927
    %1311 = vmatprep.subr.bf16.mxu0 %v924
    %1312 = vmatpush2.bf16.msra.mxu0 %v923
    %1313 = vmatprep.subr.bf16.mxu0 %v920
    %1314 = vmatpush2.bf16.msra.mxu0 %v919
    %1315 = vmatprep.mubr.bf16.mxu0 %v75
    %1316 = vmatmul.mubr.bf16.gmra.mxu0 %v74
    %v1317 = vpop.f32.mrf.mxu0
    %v1318 = vadd.f32 %v282, %v1317
    %v1319 = vpop.f32.mrf.mxu0
    %v1320 = vadd.f32 %v286, %v1319
    %v1321 = vpop.f32.mrf.mxu0
    %v1322 = vpop.f32.mrf.mxu0
    %1323 = vdwg.mxu0
    %1324 = vmatprep.subr.bf16.mxu0 %v980
    %1325 = vmatpush1.bf16.msra.mxu0 %v979
    %1326 = vmatprep.subr.bf16.mxu0 %v976
    %1327 = vmatpush1.bf16.msra.mxu0 %v975
    %1328 = vmatprep.subr.bf16.mxu0 %v972
    %1329 = vmatpush1.bf16.msra.mxu0 %v971
    %1330 = vmatprep.subr.bf16.mxu0 %v968
    %1331 = vmatpush1.bf16.msra.mxu0 %v967
    %1332 = vmatprep.subr.bf16.mxu0 %v964
    %1333 = vmatpush1.bf16.msra.mxu0 %v963
    %1334 = vmatprep.subr.bf16.mxu0 %v960
    %1335 = vmatpush1.bf16.msra.mxu0 %v959
    %1336 = vmatprep.subr.bf16.mxu0 %v956
    %1337 = vmatpush1.bf16.msra.mxu0 %v955
    %1338 = vmatprep.subr.bf16.mxu0 %v952
    %1339 = vmatpush1.bf16.msra.mxu0 %v951
    %1340 = vmatprep.subr.bf16.mxu0 %v1012
    %1341 = vmatpush2.bf16.msra.mxu0 %v1011
    %1342 = vmatprep.subr.bf16.mxu0 %v1008
    %1343 = vmatpush2.bf16.msra.mxu0 %v1007
    %1344 = vmatprep.subr.bf16.mxu0 %v1004
    %1345 = vmatpush2.bf16.msra.mxu0 %v1003
    %1346 = vmatprep.subr.bf16.mxu0 %v1000
    %1347 = vmatpush2.bf16.msra.mxu0 %v999
    %1348 = vmatprep.subr.bf16.mxu0 %v996
    %1349 = vmatpush2.bf16.msra.mxu0 %v995
    %1350 = vmatprep.subr.bf16.mxu0 %v992
    %1351 = vmatpush2.bf16.msra.mxu0 %v991
    %1352 = vmatprep.subr.bf16.mxu0 %v988
    %1353 = vmatpush2.bf16.msra.mxu0 %v987
    %1354 = vmatprep.subr.bf16.mxu0 %v984
    %1355 = vmatpush2.bf16.msra.mxu0 %v983
    %1356 = vmatprep.mubr.bf16.mxu0 %v77
    %1357 = vmatmul.mubr.bf16.gmra.mxu0 %v76
    %v1358 = vpop.f32.mrf.mxu0
    %v1359 = vadd.f32 %v1318, %v1358
    %v1360 = vpop.f32.mrf.mxu0
    %v1361 = vadd.f32 %v1320, %v1360
    %v1362 = vpop.f32.mrf.mxu0
    %v1363 = vpop.f32.mrf.mxu0
    %1364 = vdwg.mxu0
    %1365 = vmatprep.subr.bf16.mxu0 %v1044
    %1366 = vmatpush1.bf16.msra.mxu0 %v1043
    %1367 = vmatprep.subr.bf16.mxu0 %v1040
    %1368 = vmatpush1.bf16.msra.mxu0 %v1039
    %1369 = vmatprep.subr.bf16.mxu0 %v1036
    %1370 = vmatpush1.bf16.msra.mxu0 %v1035
    %1371 = vmatprep.subr.bf16.mxu0 %v1032
    %1372 = vmatpush1.bf16.msra.mxu0 %v1031
    %1373 = vmatprep.subr.bf16.mxu0 %v1028
    %1374 = vmatpush1.bf16.msra.mxu0 %v1027
    %1375 = vmatprep.subr.bf16.mxu0 %v1024
    %1376 = vmatpush1.bf16.msra.mxu0 %v1023
    %1377 = vmatprep.subr.bf16.mxu0 %v1020
    %1378 = vmatpush1.bf16.msra.mxu0 %v1019
    %1379 = vmatprep.subr.bf16.mxu0 %v1016
    %1380 = vmatpush1.bf16.msra.mxu0 %v1015
    %1381 = vmatprep.subr.bf16.mxu0 %v1076
    %1382 = vmatpush2.bf16.msra.mxu0 %v1075
    %1383 = vmatprep.subr.bf16.mxu0 %v1072
    %1384 = vmatpush2.bf16.msra.mxu0 %v1071
    %1385 = vmatprep.subr.bf16.mxu0 %v1068
    %1386 = vmatpush2.bf16.msra.mxu0 %v1067
    %1387 = vmatprep.subr.bf16.mxu0 %v1064
    %1388 = vmatpush2.bf16.msra.mxu0 %v1063
    %1389 = vmatprep.subr.bf16.mxu0 %v1060
    %1390 = vmatpush2.bf16.msra.mxu0 %v1059
    %1391 = vmatprep.subr.bf16.mxu0 %v1056
    %1392 = vmatpush2.bf16.msra.mxu0 %v1055
    %1393 = vmatprep.subr.bf16.mxu0 %v1052
    %1394 = vmatpush2.bf16.msra.mxu0 %v1051
    %1395 = vmatprep.subr.bf16.mxu0 %v1048
    %1396 = vmatpush2.bf16.msra.mxu0 %v1047
    %1397 = vmatprep.mubr.bf16.mxu0 %v79
    %1398 = vmatmul.mubr.bf16.gmra.mxu0 %v78
    %v1399 = vpop.f32.mrf.mxu0
    %v1400 = vadd.f32 %v1359, %v1399
    %v1401 = vpop.f32.mrf.mxu0
    %v1402 = vadd.f32 %v1361, %v1401
    %v1403 = vpop.f32.mrf.mxu0
    %v1404 = vpop.f32.mrf.mxu0
    %1405 = vdwg.mxu0
    %1406 = vmatprep.subr.bf16.mxu0 0
    %1407 = vmatpush1.bf16.msra.mxu0 0
    %1408 = vmatprep.subr.bf16.mxu0 0
    %1409 = vmatpush1.bf16.msra.mxu0 0
    %1410 = vmatprep.subr.bf16.mxu0 0
    %1411 = vmatpush1.bf16.msra.mxu0 0
    %1412 = vmatprep.subr.bf16.mxu0 0
    %1413 = vmatpush1.bf16.msra.mxu0 0
    %1414 = vmatprep.subr.bf16.mxu0 0
    %1415 = vmatpush1.bf16.msra.mxu0 0
    %1416 = vmatprep.subr.bf16.mxu0 0
    %1417 = vmatpush1.bf16.msra.mxu0 0
    %1418 = vmatprep.subr.bf16.mxu0 0
    %1419 = vmatpush1.bf16.msra.mxu0 0
    %1420 = vmatprep.subr.bf16.mxu0 %v1080
    %1421 = vmatpush1.bf16.msra.mxu0 %v1079
    %1422 = vmatprep.subr.bf16.mxu0 0
    %1423 = vmatpush2.bf16.msra.mxu0 0
    %1424 = vmatprep.subr.bf16.mxu0 0
    %1425 = vmatpush2.bf16.msra.mxu0 0
    %1426 = vmatprep.subr.bf16.mxu0 0
    %1427 = vmatpush2.bf16.msra.mxu0 0
    %1428 = vmatprep.subr.bf16.mxu0 0
    %1429 = vmatpush2.bf16.msra.mxu0 0
    %1430 = vmatprep.subr.bf16.mxu0 0
    %1431 = vmatpush2.bf16.msra.mxu0 0
    %1432 = vmatprep.subr.bf16.mxu0 0
    %1433 = vmatpush2.bf16.msra.mxu0 0
    %1434 = vmatprep.subr.bf16.mxu0 0
    %1435 = vmatpush2.bf16.msra.mxu0 0
    %1436 = vmatprep.subr.bf16.mxu0 0
    %1437 = vmatpush2.bf16.msra.mxu0 0
    %1438 = vmatprep.mubr.bf16.mxu0 0
    %1439 = vmatmul.mubr.bf16.gmra.mxu0 %v1281
    %v1440 = vpop.f32.mrf.mxu0
    %v1441 = vadd.f32 %v1400, %v1440
    %v1442 = vpop.f32.mrf.mxu0
    %v1443 = vadd.f32 %v1402, %v1442
    %v1444 = vpop.f32.mrf.mxu0
    %v1445 = vpop.f32.mrf.mxu0
    %1446 = vdwg.mxu0
    %1447 = vmatprep.subr.bf16.mxu0 %v918
    %1448 = vmatpush1.bf16.msra.mxu0 %v917
    %1449 = vmatprep.subr.bf16.mxu0 %v914
    %1450 = vmatpush1.bf16.msra.mxu0 %v913
    %1451 = vmatprep.subr.bf16.mxu0 %v910
    %1452 = vmatpush1.bf16.msra.mxu0 %v909
    %1453 = vmatprep.subr.bf16.mxu0 %v906
    %1454 = vmatpush1.bf16.msra.mxu0 %v905
    %1455 = vmatprep.subr.bf16.mxu0 %v902
    %1456 = vmatpush1.bf16.msra.mxu0 %v901
    %1457 = vmatprep.subr.bf16.mxu0 %v898
    %1458 = vmatpush1.bf16.msra.mxu0 %v897
    %1459 = vmatprep.subr.bf16.mxu0 %v894
    %1460 = vmatpush1.bf16.msra.mxu0 %v893
    %1461 = vmatprep.subr.bf16.mxu0 %v890
    %1462 = vmatpush1.bf16.msra.mxu0 %v889
    %1463 = vmatprep.subr.bf16.mxu0 %v950
    %1464 = vmatpush2.bf16.msra.mxu0 %v949
    %1465 = vmatprep.subr.bf16.mxu0 %v946
    %1466 = vmatpush2.bf16.msra.mxu0 %v945
    %1467 = vmatprep.subr.bf16.mxu0 %v942
    %1468 = vmatpush2.bf16.msra.mxu0 %v941
    %1469 = vmatprep.subr.bf16.mxu0 %v938
    %1470 = vmatpush2.bf16.msra.mxu0 %v937
    %1471 = vmatprep.subr.bf16.mxu0 %v934
    %1472 = vmatpush2.bf16.msra.mxu0 %v933
    %1473 = vmatprep.subr.bf16.mxu0 %v930
    %1474 = vmatpush2.bf16.msra.mxu0 %v929
    %1475 = vmatprep.subr.bf16.mxu0 %v926
    %1476 = vmatpush2.bf16.msra.mxu0 %v925
    %1477 = vmatprep.subr.bf16.mxu0 %v922
    %1478 = vmatpush2.bf16.msra.mxu0 %v921
    %1479 = vmatprep.mubr.bf16.mxu0 %v75
    %1480 = vmatmul.mubr.bf16.gmra.mxu0 %v74
    %v1481 = vpop.f32.mrf.mxu0
    %v1482 = vadd.f32 %v290, %v1481
    %v1483 = vpop.f32.mrf.mxu0
    %v1484 = vadd.f32 %v294, %v1483
    %v1485 = vpop.f32.mrf.mxu0
    %v1486 = vpop.f32.mrf.mxu0
    %1487 = vdwg.mxu0
    %1488 = vmatprep.subr.bf16.mxu0 %v982
    %1489 = vmatpush1.bf16.msra.mxu0 %v981
    %1490 = vmatprep.subr.bf16.mxu0 %v978
    %1491 = vmatpush1.bf16.msra.mxu0 %v977
    %1492 = vmatprep.subr.bf16.mxu0 %v974
    %1493 = vmatpush1.bf16.msra.mxu0 %v973
    %1494 = vmatprep.subr.bf16.mxu0 %v970
    %1495 = vmatpush1.bf16.msra.mxu0 %v969
    %1496 = vmatprep.subr.bf16.mxu0 %v966
    %1497 = vmatpush1.bf16.msra.mxu0 %v965
    %1498 = vmatprep.subr.bf16.mxu0 %v962
    %1499 = vmatpush1.bf16.msra.mxu0 %v961
    %1500 = vmatprep.subr.bf16.mxu0 %v958
    %1501 = vmatpush1.bf16.msra.mxu0 %v957
    %1502 = vmatprep.subr.bf16.mxu0 %v954
    %1503 = vmatpush1.bf16.msra.mxu0 %v953
    %1504 = vmatprep.subr.bf16.mxu0 %v1014
    %1505 = vmatpush2.bf16.msra.mxu0 %v1013
    %1506 = vmatprep.subr.bf16.mxu0 %v1010
    %1507 = vmatpush2.bf16.msra.mxu0 %v1009
    %1508 = vmatprep.subr.bf16.mxu0 %v1006
    %1509 = vmatpush2.bf16.msra.mxu0 %v1005
    %1510 = vmatprep.subr.bf16.mxu0 %v1002
    %1511 = vmatpush2.bf16.msra.mxu0 %v1001
    %1512 = vmatprep.subr.bf16.mxu0 %v998
    %1513 = vmatpush2.bf16.msra.mxu0 %v997
    %1514 = vmatprep.subr.bf16.mxu0 %v994
    %1515 = vmatpush2.bf16.msra.mxu0 %v993
    %1516 = vmatprep.subr.bf16.mxu0 %v990
    %1517 = vmatpush2.bf16.msra.mxu0 %v989
    %1518 = vmatprep.subr.bf16.mxu0 %v986
    %1519 = vmatpush2.bf16.msra.mxu0 %v985
    %1520 = vmatprep.mubr.bf16.mxu0 %v77
    %1521 = vmatmul.mubr.bf16.gmra.mxu0 %v76
    %v1522 = vpop.f32.mrf.mxu0
    %v1523 = vadd.f32 %v1482, %v1522
    %v1524 = vpop.f32.mrf.mxu0
    %v1525 = vadd.f32 %v1484, %v1524
    %v1526 = vpop.f32.mrf.mxu0
    %v1527 = vpop.f32.mrf.mxu0
    %1528 = vdwg.mxu0
    %1529 = vmatprep.subr.bf16.mxu0 %v1046
    %1530 = vmatpush1.bf16.msra.mxu0 %v1045
    %1531 = vmatprep.subr.bf16.mxu0 %v1042
    %1532 = vmatpush1.bf16.msra.mxu0 %v1041
    %1533 = vmatprep.subr.bf16.mxu0 %v1038
    %1534 = vmatpush1.bf16.msra.mxu0 %v1037
    %1535 = vmatprep.subr.bf16.mxu0 %v1034
    %1536 = vmatpush1.bf16.msra.mxu0 %v1033
    %1537 = vmatprep.subr.bf16.mxu0 %v1030
    %1538 = vmatpush1.bf16.msra.mxu0 %v1029
    %1539 = vmatprep.subr.bf16.mxu0 %v1026
    %1540 = vmatpush1.bf16.msra.mxu0 %v1025
    %1541 = vmatprep.subr.bf16.mxu0 %v1022
    %1542 = vmatpush1.bf16.msra.mxu0 %v1021
    %1543 = vmatprep.subr.bf16.mxu0 %v1018
    %1544 = vmatpush1.bf16.msra.mxu0 %v1017
    %1545 = vmatprep.subr.bf16.mxu0 %v1078
    %1546 = vmatpush2.bf16.msra.mxu0 %v1077
    %1547 = vmatprep.subr.bf16.mxu0 %v1074
    %1548 = vmatpush2.bf16.msra.mxu0 %v1073
    %1549 = vmatprep.subr.bf16.mxu0 %v1070
    %1550 = vmatpush2.bf16.msra.mxu0 %v1069
    %1551 = vmatprep.subr.bf16.mxu0 %v1066
    %1552 = vmatpush2.bf16.msra.mxu0 %v1065
    %1553 = vmatprep.subr.bf16.mxu0 %v1062
    %1554 = vmatpush2.bf16.msra.mxu0 %v1061
    %1555 = vmatprep.subr.bf16.mxu0 %v1058
    %1556 = vmatpush2.bf16.msra.mxu0 %v1057
    %1557 = vmatprep.subr.bf16.mxu0 %v1054
    %1558 = vmatpush2.bf16.msra.mxu0 %v1053
    %1559 = vmatprep.subr.bf16.mxu0 %v1050
    %1560 = vmatpush2.bf16.msra.mxu0 %v1049
    %1561 = vmatprep.mubr.bf16.mxu0 %v79
    %1562 = vmatmul.mubr.bf16.gmra.mxu0 %v78
    %v1563 = vpop.f32.mrf.mxu0
    %v1564 = vadd.f32 %v1523, %v1563
    %v1565 = vpop.f32.mrf.mxu0
    %v1566 = vadd.f32 %v1525, %v1565
    %v1567 = vpop.f32.mrf.mxu0
    %v1568 = vpop.f32.mrf.mxu0
    %1569 = vdwg.mxu0
    %1570 = vmatprep.subr.bf16.mxu0 0
    %1571 = vmatpush1.bf16.msra.mxu0 0
    %1572 = vmatprep.subr.bf16.mxu0 0
    %1573 = vmatpush1.bf16.msra.mxu0 0
    %1574 = vmatprep.subr.bf16.mxu0 0
    %1575 = vmatpush1.bf16.msra.mxu0 0
    %1576 = vmatprep.subr.bf16.mxu0 0
    %1577 = vmatpush1.bf16.msra.mxu0 0
    %1578 = vmatprep.subr.bf16.mxu0 0
    %1579 = vmatpush1.bf16.msra.mxu0 0
    %1580 = vmatprep.subr.bf16.mxu0 0
    %1581 = vmatpush1.bf16.msra.mxu0 0
    %1582 = vmatprep.subr.bf16.mxu0 0
    %1583 = vmatpush1.bf16.msra.mxu0 0
    %1584 = vmatprep.subr.bf16.mxu0 %v1082
    %1585 = vmatpush1.bf16.msra.mxu0 %v1081
    %1586 = vmatprep.subr.bf16.mxu0 0
    %1587 = vmatpush2.bf16.msra.mxu0 0
    %1588 = vmatprep.subr.bf16.mxu0 0
    %1589 = vmatpush2.bf16.msra.mxu0 0
    %1590 = vmatprep.subr.bf16.mxu0 0
    %1591 = vmatpush2.bf16.msra.mxu0 0
    %1592 = vmatprep.subr.bf16.mxu0 0
    %1593 = vmatpush2.bf16.msra.mxu0 0
    %1594 = vmatprep.subr.bf16.mxu0 0
    %1595 = vmatpush2.bf16.msra.mxu0 0
    %1596 = vmatprep.subr.bf16.mxu0 0
    %1597 = vmatpush2.bf16.msra.mxu0 0
    %1598 = vmatprep.subr.bf16.mxu0 0
    %1599 = vmatpush2.bf16.msra.mxu0 0
    %1600 = vmatprep.subr.bf16.mxu0 0
    %1601 = vmatpush2.bf16.msra.mxu0 0
    %1602 = vmatprep.mubr.bf16.mxu0 0
    %1603 = vmatmul.mubr.bf16.gmra.mxu0 %v1281
    %v1604 = vpop.f32.mrf.mxu0
    %v1605 = vadd.f32 %v1564, %v1604
    %v1606 = vpop.f32.mrf.mxu0
    %v1607 = vadd.f32 %v1566, %v1606
    %v1608 = vpop.f32.mrf.mxu0
    %v1609 = vpop.f32.mrf.mxu0
    %1610 = vdwg.mxu0
    %v1611 = vmax.f32 %v1441, 0.0
    %v1612 = vmax.f32 %v1443, 0.0
    %v1613 = vmax.f32 %v1605, 0.0
    %v1614 = vmax.f32 %v1607, 0.0
    %v1615 = vpack.c.bf16 %v1611, %v1611
    %v1616 = vpack.c.bf16 %v1612, %v1612
    %v1617 = vpack.c.bf16 %v1613, %v1613
    %v1618 = vpack.c.bf16 %v1614, %v1614
    %v1619 = vld [vmem:[#allocation4] sm:$0xff]
    %v1620 = vld [vmem:[#allocation4 + $0x8] sm:$0xff]
    %v1621 = vld [vmem:[#allocation4 + $0x10] sm:$0xff]
    %v1622 = vld [vmem:[#allocation4 + $0x18] sm:$0xff]
    %v1623 = vld [vmem:[#allocation4 + $0x20] sm:$0xff]
    %v1624 = vld [vmem:[#allocation4 + $0x28] sm:$0xff]
    %v1625 = vld [vmem:[#allocation4 + $0x30] sm:$0xff]
    %v1626 = vld [vmem:[#allocation4 + $0x38] sm:$0xff]
    %v1627 = vld [vmem:[#allocation4 + $0x40] sm:$0xff]
    %v1628 = vld [vmem:[#allocation4 + $0x48] sm:$0xff]
    %v1629 = vld [vmem:[#allocation4 + $0x50] sm:$0xff]
    %v1630 = vld [vmem:[#allocation4 + $0x58] sm:$0xff]
    %v1631 = vld [vmem:[#allocation4 + $0x60] sm:$0xff]
    %v1632 = vld [vmem:[#allocation4 + $0x68] sm:$0xff]
    %v1633 = vld [vmem:[#allocation4 + $0x70] sm:$0xff]
    %v1634 = vld [vmem:[#allocation4 + $0x78] sm:$0xff]
    %v1635 = vld [vmem:[#allocation4 + $0x80] sm:$0xff]
    %v1636 = vld [vmem:[#allocation4 + $0x88] sm:$0xff]
    %v1637 = vld [vmem:[#allocation4 + $0x90] sm:$0xff]
    %v1638 = vld [vmem:[#allocation4 + $0x98] sm:$0xff]
    %v1639 = vld [vmem:[#allocation4 + $0xa0] sm:$0xff]
    %v1640 = vld [vmem:[#allocation4 + $0xa8] sm:$0xff]
    %v1641 = vld [vmem:[#allocation4 + $0xb0] sm:$0xff]
    %v1642 = vld [vmem:[#allocation4 + $0xb8] sm:$0xff]
    %v1643 = vld [vmem:[#allocation4 + $0xc0] sm:$0xff]
    %v1644 = vld [vmem:[#allocation4 + $0xc8] sm:$0xff]
    %v1645 = vld [vmem:[#allocation4 + $0xd0] sm:$0xff]
    %v1646 = vld [vmem:[#allocation4 + $0xd8] sm:$0xff]
    %v1647 = vld [vmem:[#allocation4 + $0xe0] sm:$0xff]
    %v1648 = vld [vmem:[#allocation4 + $0xe8] sm:$0xff]
    %v1649 = vld [vmem:[#allocation4 + $0xf0] sm:$0xff]
    %v1650 = vld [vmem:[#allocation4 + $0xf8] sm:$0xff]
    %v1651 = vld [vmem:[#allocation4 + $0x100] sm:$0xff]
    %v1652 = vld [vmem:[#allocation4 + $0x108] sm:$0xff]
    %v1653 = vld [vmem:[#allocation4 + $0x110] sm:$0xff]
    %v1654 = vld [vmem:[#allocation4 + $0x118] sm:$0xff]
    %v1655 = vld [vmem:[#allocation4 + $0x120] sm:$0xff]
    %v1656 = vld [vmem:[#allocation4 + $0x128] sm:$0xff]
    %v1657 = vld [vmem:[#allocation4 + $0x130] sm:$0xff]
    %v1658 = vld [vmem:[#allocation4 + $0x138] sm:$0xff]
    %v1659 = vld [vmem:[#allocation4 + $0x140] sm:$0xff]
    %v1660 = vld [vmem:[#allocation4 + $0x148] sm:$0xff]
    %v1661 = vld [vmem:[#allocation4 + $0x150] sm:$0xff]
    %v1662 = vld [vmem:[#allocation4 + $0x158] sm:$0xff]
    %v1663 = vld [vmem:[#allocation4 + $0x160] sm:$0xff]
    %v1664 = vld [vmem:[#allocation4 + $0x168] sm:$0xff]
    %v1665 = vld [vmem:[#allocation4 + $0x170] sm:$0xff]
    %v1666 = vld [vmem:[#allocation4 + $0x178] sm:$0xff]
    %v1667 = vld [vmem:[#allocation4 + $0x180] sm:$0xff]
    %v1668 = vld [vmem:[#allocation4 + $0x188] sm:$0xff]
    %v1669 = vld [vmem:[#allocation4 + $0x190] sm:$0xff]
    %v1670 = vld [vmem:[#allocation4 + $0x198] sm:$0xff]
    %v1671 = vld [vmem:[#allocation4 + $0x1a0] sm:$0xff]
    %v1672 = vld [vmem:[#allocation4 + $0x1a8] sm:$0xff]
    %v1673 = vld [vmem:[#allocation4 + $0x1b0] sm:$0xff]
    %v1674 = vld [vmem:[#allocation4 + $0x1b8] sm:$0xff]
    %v1675 = vld [vmem:[#allocation4 + $0x1c0] sm:$0xff]
    %v1676 = vld [vmem:[#allocation4 + $0x1c8] sm:$0xff]
    %v1677 = vld [vmem:[#allocation4 + $0x1d0] sm:$0xff]
    %v1678 = vld [vmem:[#allocation4 + $0x1d8] sm:$0xff]
    %v1679 = vld [vmem:[#allocation4 + $0x1e0] sm:$0xff]
    %v1680 = vld [vmem:[#allocation4 + $0x1e8] sm:$0xff]
    %v1681 = vld [vmem:[#allocation4 + $0x1f0] sm:$0xff]
    %v1682 = vld [vmem:[#allocation4 + $0x1f8] sm:$0xff]
    %v1683 = vld [vmem:[%s4] sm:$0x3]
    %v1685 = vlaneseq
    %v1686 = vshrl.u32 %v1685, 7
    %v1687 = vsub.s32 0, %v1686
    %v1688 = vrot.slane %v1683, %v1687
    %v1689 = vlaneseq
    %v1690 = vshrl.u32 %v1689, 7
    %v1691 = vsub.s32 1, %v1690
    %v1692 = vrot.slane %v1683, %v1691
    %v1759 = vunpack.c.l.b16 %v1619
    %v1760 = vunpack.c.h.b16 %v1619
    %v1761 = vunpack.c.l.b16 %v1620
    %v1762 = vunpack.c.h.b16 %v1620
    %v1763 = vunpack.c.l.b16 %v1621
    %v1764 = vunpack.c.h.b16 %v1621
    %v1765 = vunpack.c.l.b16 %v1622
    %v1766 = vunpack.c.h.b16 %v1622
    %v1767 = vunpack.c.l.b16 %v1623
    %v1768 = vunpack.c.h.b16 %v1623
    %v1769 = vunpack.c.l.b16 %v1624
    %v1770 = vunpack.c.h.b16 %v1624
    %v1771 = vunpack.c.l.b16 %v1625
    %v1772 = vunpack.c.h.b16 %v1625
    %v1773 = vunpack.c.l.b16 %v1626
    %v1774 = vunpack.c.h.b16 %v1626
    %v1775 = vunpack.c.l.b16 %v1627
    %v1776 = vunpack.c.h.b16 %v1627
    %v1777 = vunpack.c.l.b16 %v1628
    %v1778 = vunpack.c.h.b16 %v1628
    %v1779 = vunpack.c.l.b16 %v1629
    %v1780 = vunpack.c.h.b16 %v1629
    %v1781 = vunpack.c.l.b16 %v1630
    %v1782 = vunpack.c.h.b16 %v1630
    %v1783 = vunpack.c.l.b16 %v1631
    %v1784 = vunpack.c.h.b16 %v1631
    %v1785 = vunpack.c.l.b16 %v1632
    %v1786 = vunpack.c.h.b16 %v1632
    %v1787 = vunpack.c.l.b16 %v1633
    %v1788 = vunpack.c.h.b16 %v1633
    %v1789 = vunpack.c.l.b16 %v1634
    %v1790 = vunpack.c.h.b16 %v1634
    %v1791 = vunpack.c.l.b16 %v1635
    %v1792 = vunpack.c.h.b16 %v1635
    %v1793 = vunpack.c.l.b16 %v1636
    %v1794 = vunpack.c.h.b16 %v1636
    %v1795 = vunpack.c.l.b16 %v1637
    %v1796 = vunpack.c.h.b16 %v1637
    %v1797 = vunpack.c.l.b16 %v1638
    %v1798 = vunpack.c.h.b16 %v1638
    %v1799 = vunpack.c.l.b16 %v1639
    %v1800 = vunpack.c.h.b16 %v1639
    %v1801 = vunpack.c.l.b16 %v1640
    %v1802 = vunpack.c.h.b16 %v1640
    %v1803 = vunpack.c.l.b16 %v1641
    %v1804 = vunpack.c.h.b16 %v1641
    %v1805 = vunpack.c.l.b16 %v1642
    %v1806 = vunpack.c.h.b16 %v1642
    %v1807 = vunpack.c.l.b16 %v1643
    %v1808 = vunpack.c.h.b16 %v1643
    %v1809 = vunpack.c.l.b16 %v1644
    %v1810 = vunpack.c.h.b16 %v1644
    %v1811 = vunpack.c.l.b16 %v1645
    %v1812 = vunpack.c.h.b16 %v1645
    %v1813 = vunpack.c.l.b16 %v1646
    %v1814 = vunpack.c.h.b16 %v1646
    %v1815 = vunpack.c.l.b16 %v1647
    %v1816 = vunpack.c.h.b16 %v1647
    %v1817 = vunpack.c.l.b16 %v1648
    %v1818 = vunpack.c.h.b16 %v1648
    %v1819 = vunpack.c.l.b16 %v1649
    %v1820 = vunpack.c.h.b16 %v1649
    %v1821 = vunpack.c.l.b16 %v1650
    %v1822 = vunpack.c.h.b16 %v1650
    %v1823 = vunpack.c.l.b16 %v1651
    %v1824 = vunpack.c.h.b16 %v1651
    %v1825 = vunpack.c.l.b16 %v1652
    %v1826 = vunpack.c.h.b16 %v1652
    %v1827 = vunpack.c.l.b16 %v1653
    %v1828 = vunpack.c.h.b16 %v1653
    %v1829 = vunpack.c.l.b16 %v1654
    %v1830 = vunpack.c.h.b16 %v1654
    %v1831 = vunpack.c.l.b16 %v1655
    %v1832 = vunpack.c.h.b16 %v1655
    %v1833 = vunpack.c.l.b16 %v1656
    %v1834 = vunpack.c.h.b16 %v1656
    %v1835 = vunpack.c.l.b16 %v1657
    %v1836 = vunpack.c.h.b16 %v1657
    %v1837 = vunpack.c.l.b16 %v1658
    %v1838 = vunpack.c.h.b16 %v1658
    %v1839 = vunpack.c.l.b16 %v1659
    %v1840 = vunpack.c.h.b16 %v1659
    %v1841 = vunpack.c.l.b16 %v1660
    %v1842 = vunpack.c.h.b16 %v1660
    %v1843 = vunpack.c.l.b16 %v1661
    %v1844 = vunpack.c.h.b16 %v1661
    %v1845 = vunpack.c.l.b16 %v1662
    %v1846 = vunpack.c.h.b16 %v1662
    %v1847 = vunpack.c.l.b16 %v1663
    %v1848 = vunpack.c.h.b16 %v1663
    %v1849 = vunpack.c.l.b16 %v1664
    %v1850 = vunpack.c.h.b16 %v1664
    %v1851 = vunpack.c.l.b16 %v1665
    %v1852 = vunpack.c.h.b16 %v1665
    %v1853 = vunpack.c.l.b16 %v1666
    %v1854 = vunpack.c.h.b16 %v1666
    %v1855 = vunpack.c.l.b16 %v1667
    %v1856 = vunpack.c.h.b16 %v1667
    %v1857 = vunpack.c.l.b16 %v1668
    %v1858 = vunpack.c.h.b16 %v1668
    %v1859 = vunpack.c.l.b16 %v1669
    %v1860 = vunpack.c.h.b16 %v1669
    %v1861 = vunpack.c.l.b16 %v1670
    %v1862 = vunpack.c.h.b16 %v1670
    %v1863 = vunpack.c.l.b16 %v1671
    %v1864 = vunpack.c.h.b16 %v1671
    %v1865 = vunpack.c.l.b16 %v1672
    %v1866 = vunpack.c.h.b16 %v1672
    %v1867 = vunpack.c.l.b16 %v1673
    %v1868 = vunpack.c.h.b16 %v1673
    %v1869 = vunpack.c.l.b16 %v1674
    %v1870 = vunpack.c.h.b16 %v1674
    %v1871 = vunpack.c.l.b16 %v1675
    %v1872 = vunpack.c.h.b16 %v1675
    %v1873 = vunpack.c.l.b16 %v1676
    %v1874 = vunpack.c.h.b16 %v1676
    %v1875 = vunpack.c.l.b16 %v1677
    %v1876 = vunpack.c.h.b16 %v1677
    %v1877 = vunpack.c.l.b16 %v1678
    %v1878 = vunpack.c.h.b16 %v1678
    %v1879 = vunpack.c.l.b16 %v1679
    %v1880 = vunpack.c.h.b16 %v1679
    %v1881 = vunpack.c.l.b16 %v1680
    %v1882 = vunpack.c.h.b16 %v1680
    %v1883 = vunpack.c.l.b16 %v1681
    %v1884 = vunpack.c.h.b16 %v1681
    %v1885 = vunpack.c.l.b16 %v1682
    %v1886 = vunpack.c.h.b16 %v1682
    %v1887 = vpack.c.b16 %v1761, %v1759
    %v1888 = vpack.c.b16 %v1762, %v1760
    %v1889 = vpack.c.b16 %v1765, %v1763
    %v1890 = vpack.c.b16 %v1766, %v1764
    %v1891 = vpack.c.b16 %v1769, %v1767
    %v1892 = vpack.c.b16 %v1770, %v1768
    %v1893 = vpack.c.b16 %v1773, %v1771
    %v1894 = vpack.c.b16 %v1774, %v1772
    %v1895 = vpack.c.b16 %v1777, %v1775
    %v1896 = vpack.c.b16 %v1778, %v1776
    %v1897 = vpack.c.b16 %v1781, %v1779
    %v1898 = vpack.c.b16 %v1782, %v1780
    %v1899 = vpack.c.b16 %v1785, %v1783
    %v1900 = vpack.c.b16 %v1786, %v1784
    %v1901 = vpack.c.b16 %v1789, %v1787
    %v1902 = vpack.c.b16 %v1790, %v1788
    %v1903 = vpack.c.b16 %v1793, %v1791
    %v1904 = vpack.c.b16 %v1794, %v1792
    %v1905 = vpack.c.b16 %v1797, %v1795
    %v1906 = vpack.c.b16 %v1798, %v1796
    %v1907 = vpack.c.b16 %v1801, %v1799
    %v1908 = vpack.c.b16 %v1802, %v1800
    %v1909 = vpack.c.b16 %v1805, %v1803
    %v1910 = vpack.c.b16 %v1806, %v1804
    %v1911 = vpack.c.b16 %v1809, %v1807
    %v1912 = vpack.c.b16 %v1810, %v1808
    %v1913 = vpack.c.b16 %v1813, %v1811
    %v1914 = vpack.c.b16 %v1814, %v1812
    %v1915 = vpack.c.b16 %v1817, %v1815
    %v1916 = vpack.c.b16 %v1818, %v1816
    %v1917 = vpack.c.b16 %v1821, %v1819
    %v1918 = vpack.c.b16 %v1822, %v1820
    %v1919 = vpack.c.b16 %v1825, %v1823
    %v1920 = vpack.c.b16 %v1826, %v1824
    %v1921 = vpack.c.b16 %v1829, %v1827
    %v1922 = vpack.c.b16 %v1830, %v1828
    %v1923 = vpack.c.b16 %v1833, %v1831
    %v1924 = vpack.c.b16 %v1834, %v1832
    %v1925 = vpack.c.b16 %v1837, %v1835
    %v1926 = vpack.c.b16 %v1838, %v1836
    %v1927 = vpack.c.b16 %v1841, %v1839
    %v1928 = vpack.c.b16 %v1842, %v1840
    %v1929 = vpack.c.b16 %v1845, %v1843
    %v1930 = vpack.c.b16 %v1846, %v1844
    %v1931 = vpack.c.b16 %v1849, %v1847
    %v1932 = vpack.c.b16 %v1850, %v1848
    %v1933 = vpack.c.b16 %v1853, %v1851
    %v1934 = vpack.c.b16 %v1854, %v1852
    %v1935 = vpack.c.b16 %v1857, %v1855
    %v1936 = vpack.c.b16 %v1858, %v1856
    %v1937 = vpack.c.b16 %v1861, %v1859
    %v1938 = vpack.c.b16 %v1862, %v1860
    %v1939 = vpack.c.b16 %v1865, %v1863
    %v1940 = vpack.c.b16 %v1866, %v1864
    %v1941 = vpack.c.b16 %v1869, %v1867
    %v1942 = vpack.c.b16 %v1870, %v1868
    %v1943 = vpack.c.b16 %v1873, %v1871
    %v1944 = vpack.c.b16 %v1874, %v1872
    %v1945 = vpack.c.b16 %v1877, %v1875
    %v1946 = vpack.c.b16 %v1878, %v1876
    %v1947 = vpack.c.b16 %v1881, %v1879
    %v1948 = vpack.c.b16 %v1882, %v1880
    %v1949 = vpack.c.b16 %v1885, %v1883
    %v1950 = vpack.c.b16 %v1886, %v1884
    %2015 = vmatprep.subr.bf16.mxu0 %v1902
    %2016 = vmatpush1.bf16.msra.mxu0 %v1901
    %2017 = vmatprep.subr.bf16.mxu0 %v1900
    %2018 = vmatpush1.bf16.msra.mxu0 %v1899
    %2019 = vmatprep.subr.bf16.mxu0 %v1898
    %2020 = vmatpush1.bf16.msra.mxu0 %v1897
    %2021 = vmatprep.subr.bf16.mxu0 %v1896
    %2022 = vmatpush1.bf16.msra.mxu0 %v1895
    %2023 = vmatprep.subr.bf16.mxu0 %v1894
    %2024 = vmatpush1.bf16.msra.mxu0 %v1893
    %2025 = vmatprep.subr.bf16.mxu0 %v1892
    %2026 = vmatpush1.bf16.msra.mxu0 %v1891
    %2027 = vmatprep.subr.bf16.mxu0 %v1890
    %2028 = vmatpush1.bf16.msra.mxu0 %v1889
    %2029 = vmatprep.subr.bf16.mxu0 %v1888
    %2030 = vmatpush1.bf16.msra.mxu0 %v1887
    %2031 = vmatprep.subr.bf16.mxu0 %v1918
    %2032 = vmatpush2.bf16.msra.mxu0 %v1917
    %2033 = vmatprep.subr.bf16.mxu0 %v1916
    %2034 = vmatpush2.bf16.msra.mxu0 %v1915
    %2035 = vmatprep.subr.bf16.mxu0 %v1914
    %2036 = vmatpush2.bf16.msra.mxu0 %v1913
    %2037 = vmatprep.subr.bf16.mxu0 %v1912
    %2038 = vmatpush2.bf16.msra.mxu0 %v1911
    %2039 = vmatprep.subr.bf16.mxu0 %v1910
    %2040 = vmatpush2.bf16.msra.mxu0 %v1909
    %2041 = vmatprep.subr.bf16.mxu0 %v1908
    %2042 = vmatpush2.bf16.msra.mxu0 %v1907
    %2043 = vmatprep.subr.bf16.mxu0 %v1906
    %2044 = vmatpush2.bf16.msra.mxu0 %v1905
    %2045 = vmatprep.subr.bf16.mxu0 %v1904
    %2046 = vmatpush2.bf16.msra.mxu0 %v1903
    %2047 = vmatprep.mubr.bf16.mxu0 %v1616
    %2048 = vmatmul.mubr.bf16.gmra.mxu0 %v1615
    %v2049 = vpop.f32.mrf.mxu0
    %v2050 = vadd.f32 %v1688, %v2049
    %v2051 = vpop.f32.mrf.mxu0
    %v2052 = vadd.f32 %v1692, %v2051
    %v2053 = vpop.f32.mrf.mxu0
    %v2054 = vpop.f32.mrf.mxu0
    %2055 = vdwg.mxu0
    %2056 = vmatprep.subr.bf16.mxu0 %v1934
    %2057 = vmatpush1.bf16.msra.mxu0 %v1933
    %2058 = vmatprep.subr.bf16.mxu0 %v1932
    %2059 = vmatpush1.bf16.msra.mxu0 %v1931
    %2060 = vmatprep.subr.bf16.mxu0 %v1930
    %2061 = vmatpush1.bf16.msra.mxu0 %v1929
    %2062 = vmatprep.subr.bf16.mxu0 %v1928
    %2063 = vmatpush1.bf16.msra.mxu0 %v1927
    %2064 = vmatprep.subr.bf16.mxu0 %v1926
    %2065 = vmatpush1.bf16.msra.mxu0 %v1925
    %2066 = vmatprep.subr.bf16.mxu0 %v1924
    %2067 = vmatpush1.bf16.msra.mxu0 %v1923
    %2068 = vmatprep.subr.bf16.mxu0 %v1922
    %2069 = vmatpush1.bf16.msra.mxu0 %v1921
    %2070 = vmatprep.subr.bf16.mxu0 %v1920
    %2071 = vmatpush1.bf16.msra.mxu0 %v1919
    %2072 = vmatprep.subr.bf16.mxu0 %v1950
    %2073 = vmatpush2.bf16.msra.mxu0 %v1949
    %2074 = vmatprep.subr.bf16.mxu0 %v1948
    %2075 = vmatpush2.bf16.msra.mxu0 %v1947
    %2076 = vmatprep.subr.bf16.mxu0 %v1946
    %2077 = vmatpush2.bf16.msra.mxu0 %v1945
    %2078 = vmatprep.subr.bf16.mxu0 %v1944
    %2079 = vmatpush2.bf16.msra.mxu0 %v1943
    %2080 = vmatprep.subr.bf16.mxu0 %v1942
    %2081 = vmatpush2.bf16.msra.mxu0 %v1941
    %2082 = vmatprep.subr.bf16.mxu0 %v1940
    %2083 = vmatpush2.bf16.msra.mxu0 %v1939
    %2084 = vmatprep.subr.bf16.mxu0 %v1938
    %2085 = vmatpush2.bf16.msra.mxu0 %v1937
    %2086 = vmatprep.subr.bf16.mxu0 %v1936
    %2087 = vmatpush2.bf16.msra.mxu0 %v1935
    %2088 = vmatprep.mubr.bf16.mxu0 %v1618
    %2089 = vmatmul.mubr.bf16.gmra.mxu0 %v1617
    %v2090 = vpop.f32.mrf.mxu0
    %v2091 = vadd.f32 %v2050, %v2090
    %v2092 = vpop.f32.mrf.mxu0
    %v2093 = vadd.f32 %v2052, %v2092
    %v2094 = vpop.f32.mrf.mxu0
    %v2095 = vpop.f32.mrf.mxu0
    %2096 = vdwg.mxu0
    %v2097 = vmax.f32 %v2091, 0.0
    %v2098 = vmax.f32 %v2093, 0.0
    %v2099 = vpack.c.bf16 %v2097, %v2097
    %v2100 = vpack.c.bf16 %v2098, %v2098
    %v2101 = vld [vmem:[%s5] sm:$0xf]
    %v2102 = vld [vmem:[%s5 + $0x4] sm:$0xf]
    %v2103 = vld [vmem:[%s5 + $0x8] sm:$0xf]
    %v2104 = vld [vmem:[%s5 + $0xc] sm:$0xf]
    %v2105 = vld [vmem:[%s5 + $0x10] sm:$0xf]
    %v2106 = vld [vmem:[%s5 + $0x14] sm:$0xf]
    %v2107 = vld [vmem:[%s5 + $0x18] sm:$0xf]
    %v2108 = vld [vmem:[%s5 + $0x1c] sm:$0xf]
    %v2109 = vld [vmem:[%s5 + $0x20] sm:$0xf]
    %v2110 = vld [vmem:[%s5 + $0x24] sm:$0xf]
    %v2111 = vld [vmem:[%s5 + $0x28] sm:$0xf]
    %v2112 = vld [vmem:[%s5 + $0x2c] sm:$0xf]
    %v2113 = vld [vmem:[%s5 + $0x30] sm:$0xf]
    %v2114 = vld [vmem:[%s5 + $0x34] sm:$0xf]
    %v2115 = vld [vmem:[%s5 + $0x38] sm:$0xf]
    %v2116 = vld [vmem:[%s5 + $0x3c] sm:$0xf]
    %v2117 = vld [vmem:[%s5 + $0x40] sm:$0xf]
    %v2118 = vld [vmem:[%s5 + $0x44] sm:$0xf]
    %v2119 = vld [vmem:[%s5 + $0x48] sm:$0xf]
    %v2120 = vld [vmem:[%s5 + $0x4c] sm:$0xf]
    %v2121 = vld [vmem:[%s5 + $0x50] sm:$0xf]
    %v2122 = vld [vmem:[%s5 + $0x54] sm:$0xf]
    %v2123 = vld [vmem:[%s5 + $0x58] sm:$0xf]
    %v2124 = vld [vmem:[%s5 + $0x5c] sm:$0xf]
    %v2125 = vld [vmem:[%s5 + $0x60] sm:$0xf]
    %v2126 = vld [vmem:[%s5 + $0x64] sm:$0xf]
    %v2127 = vld [vmem:[%s5 + $0x68] sm:$0xf]
    %v2128 = vld [vmem:[%s5 + $0x6c] sm:$0xf]
    %v2129 = vld [vmem:[%s5 + $0x70] sm:$0xf]
    %v2130 = vld [vmem:[%s5 + $0x74] sm:$0xf]
    %v2131 = vld [vmem:[%s5 + $0x78] sm:$0xf]
    %v2132 = vld [vmem:[%s5 + $0x7c] sm:$0xf]
    %v2133 = vld [vmem:[%s6] sm:$0x1]
    %v2135 = vlaneseq
    %v2136 = vshrl.u32 %v2135, 7
    %v2137 = vsub.s32 0, %v2136
    %v2138 = vrot.slane %v2133, %v2137
    %v2172 = vunpack.c.l.b16 %v2101
    %v2173 = vunpack.c.l.b16 %v2102
    %v2174 = vunpack.c.l.b16 %v2103
    %v2175 = vunpack.c.l.b16 %v2104
    %v2176 = vunpack.c.l.b16 %v2105
    %v2177 = vunpack.c.l.b16 %v2106
    %v2178 = vunpack.c.l.b16 %v2107
    %v2179 = vunpack.c.l.b16 %v2108
    %v2180 = vunpack.c.l.b16 %v2109
    %v2181 = vunpack.c.l.b16 %v2110
    %v2182 = vunpack.c.l.b16 %v2111
    %v2183 = vunpack.c.l.b16 %v2112
    %v2184 = vunpack.c.l.b16 %v2113
    %v2185 = vunpack.c.l.b16 %v2114
    %v2186 = vunpack.c.l.b16 %v2115
    %v2187 = vunpack.c.l.b16 %v2116
    %v2188 = vunpack.c.l.b16 %v2117
    %v2189 = vunpack.c.l.b16 %v2118
    %v2190 = vunpack.c.l.b16 %v2119
    %v2191 = vunpack.c.l.b16 %v2120
    %v2192 = vunpack.c.l.b16 %v2121
    %v2193 = vunpack.c.l.b16 %v2122
    %v2194 = vunpack.c.l.b16 %v2123
    %v2195 = vunpack.c.l.b16 %v2124
    %v2196 = vunpack.c.l.b16 %v2125
    %v2197 = vunpack.c.l.b16 %v2126
    %v2198 = vunpack.c.l.b16 %v2127
    %v2199 = vunpack.c.l.b16 %v2128
    %v2200 = vunpack.c.l.b16 %v2129
    %v2201 = vunpack.c.l.b16 %v2130
    %v2202 = vunpack.c.l.b16 %v2131
    %v2203 = vunpack.c.l.b16 %v2132
    %v2204 = vpack.c.b16 %v2173, %v2172
    %v2205 = vpack.c.b16 %v2175, %v2174
    %v2206 = vpack.c.b16 %v2177, %v2176
    %v2207 = vpack.c.b16 %v2179, %v2178
    %v2208 = vpack.c.b16 %v2181, %v2180
    %v2209 = vpack.c.b16 %v2183, %v2182
    %v2210 = vpack.c.b16 %v2185, %v2184
    %v2211 = vpack.c.b16 %v2187, %v2186
    %v2212 = vpack.c.b16 %v2189, %v2188
    %v2213 = vpack.c.b16 %v2191, %v2190
    %v2214 = vpack.c.b16 %v2193, %v2192
    %v2215 = vpack.c.b16 %v2195, %v2194
    %v2216 = vpack.c.b16 %v2197, %v2196
    %v2217 = vpack.c.b16 %v2199, %v2198
    %v2218 = vpack.c.b16 %v2201, %v2200
    %v2219 = vpack.c.b16 %v2203, %v2202
    %2236 = vmatprep.subr.bf16.mxu0 0
    %2237 = vmatpush1.bf16.msra.mxu0 %v2211
    %2238 = vmatprep.subr.bf16.mxu0 0
    %2239 = vmatpush1.bf16.msra.mxu0 %v2210
    %2240 = vmatprep.subr.bf16.mxu0 0
    %2241 = vmatpush1.bf16.msra.mxu0 %v2209
    %2242 = vmatprep.subr.bf16.mxu0 0
    %2243 = vmatpush1.bf16.msra.mxu0 %v2208
    %2244 = vmatprep.subr.bf16.mxu0 0
    %2245 = vmatpush1.bf16.msra.mxu0 %v2207
    %2246 = vmatprep.subr.bf16.mxu0 0
    %2247 = vmatpush1.bf16.msra.mxu0 %v2206
    %2248 = vmatprep.subr.bf16.mxu0 0
    %2249 = vmatpush1.bf16.msra.mxu0 %v2205
    %2250 = vmatprep.subr.bf16.mxu0 0
    %2251 = vmatpush1.bf16.msra.mxu0 %v2204
    %2252 = vmatprep.subr.bf16.mxu0 0
    %2253 = vmatpush2.bf16.msra.mxu0 %v2219
    %2254 = vmatprep.subr.bf16.mxu0 0
    %2255 = vmatpush2.bf16.msra.mxu0 %v2218
    %2256 = vmatprep.subr.bf16.mxu0 0
    %2257 = vmatpush2.bf16.msra.mxu0 %v2217
    %2258 = vmatprep.subr.bf16.mxu0 0
    %2259 = vmatpush2.bf16.msra.mxu0 %v2216
    %2260 = vmatprep.subr.bf16.mxu0 0
    %2261 = vmatpush2.bf16.msra.mxu0 %v2215
    %2262 = vmatprep.subr.bf16.mxu0 0
    %2263 = vmatpush2.bf16.msra.mxu0 %v2214
    %2264 = vmatprep.subr.bf16.mxu0 0
    %2265 = vmatpush2.bf16.msra.mxu0 %v2213
    %2266 = vmatprep.subr.bf16.mxu0 0
    %2267 = vmatpush2.bf16.msra.mxu0 %v2212
    %2268 = vmatprep.mubr.bf16.mxu0 %v2100
    %2269 = vmatmul.mubr.bf16.gmra.mxu0 %v2099
    %v2270 = vpop.f32.mrf.mxu0
    %v2271 = vadd.f32 %v2138, %v2270
    %v2272 = vpop.f32.mrf.mxu0
    %v2273 = vpop.f32.mrf.mxu0
    %v2274 = vpop.f32.mrf.mxu0
    %2275 = vdwg.mxu0
    %v2276 = vmax.f32 %v2271, 0.0
    %v2277 = vpack.c.bf16 %v2276, %v2276
    %v2278 = vld [vmem:[%s7] sm:$0xf]
    %v2279 = vld [vmem:[%s7 + $0x4] sm:$0xf]
    %v2280 = vld [vmem:[%s7 + $0x8] sm:$0xf]
    %v2281 = vld [vmem:[%s7 + $0xc] sm:$0xf]
    %v2282 = vld [vmem:[%s7 + $0x10] sm:$0xf]
    %v2283 = vld [vmem:[%s7 + $0x14] sm:$0xf]
    %v2284 = vld [vmem:[%s7 + $0x18] sm:$0xf]
    %v2285 = vld [vmem:[%s7 + $0x1c] sm:$0xf]
    %v2286 = vld [vmem:[%s7 + $0x20] sm:$0xf]
    %v2287 = vld [vmem:[%s7 + $0x24] sm:$0xf]
    %v2288 = vld [vmem:[%s7 + $0x28] sm:$0xf]
    %v2289 = vld [vmem:[%s7 + $0x2c] sm:$0xf]
    %v2290 = vld [vmem:[%s7 + $0x30] sm:$0xf]
    %v2291 = vld [vmem:[%s7 + $0x34] sm:$0xf]
    %v2292 = vld [vmem:[%s7 + $0x38] sm:$0xf]
    %v2293 = vld [vmem:[%s7 + $0x3c] sm:$0xf]
    %v2294 = vld [vmem:[%s8] sm:$0x1]
    %v2296 = vlaneseq
    %v2297 = vshrl.u32 %v2296, 7
    %v2298 = vsub.s32 0, %v2297
    %v2299 = vrot.slane %v2294, %v2298
    %v2317 = vunpack.c.l.b16 %v2278
    %v2318 = vunpack.c.l.b16 %v2279
    %v2319 = vunpack.c.l.b16 %v2280
    %v2320 = vunpack.c.l.b16 %v2281
    %v2321 = vunpack.c.l.b16 %v2282
    %v2322 = vunpack.c.l.b16 %v2283
    %v2323 = vunpack.c.l.b16 %v2284
    %v2324 = vunpack.c.l.b16 %v2285
    %v2325 = vunpack.c.l.b16 %v2286
    %v2326 = vunpack.c.l.b16 %v2287
    %v2327 = vunpack.c.l.b16 %v2288
    %v2328 = vunpack.c.l.b16 %v2289
    %v2329 = vunpack.c.l.b16 %v2290
    %v2330 = vunpack.c.l.b16 %v2291
    %v2331 = vunpack.c.l.b16 %v2292
    %v2332 = vunpack.c.l.b16 %v2293
    %v2333 = vpack.c.b16 %v2318, %v2317
    %v2334 = vpack.c.b16 %v2320, %v2319
    %v2335 = vpack.c.b16 %v2322, %v2321
    %v2336 = vpack.c.b16 %v2324, %v2323
    %v2337 = vpack.c.b16 %v2326, %v2325
    %v2338 = vpack.c.b16 %v2328, %v2327
    %v2339 = vpack.c.b16 %v2330, %v2329
    %v2340 = vpack.c.b16 %v2332, %v2331
    %2349 = vmatprep.subr.bf16.mxu0 0
    %2350 = vmatpush1.bf16.msra.mxu0 %v2340
    %2351 = vmatprep.subr.bf16.mxu0 0
    %2352 = vmatpush1.bf16.msra.mxu0 %v2339
    %2353 = vmatprep.subr.bf16.mxu0 0
    %2354 = vmatpush1.bf16.msra.mxu0 %v2338
    %2355 = vmatprep.subr.bf16.mxu0 0
    %2356 = vmatpush1.bf16.msra.mxu0 %v2337
    %2357 = vmatprep.subr.bf16.mxu0 0
    %2358 = vmatpush1.bf16.msra.mxu0 %v2336
    %2359 = vmatprep.subr.bf16.mxu0 0
    %2360 = vmatpush1.bf16.msra.mxu0 %v2335
    %2361 = vmatprep.subr.bf16.mxu0 0
    %2362 = vmatpush1.bf16.msra.mxu0 %v2334
    %2363 = vmatprep.subr.bf16.mxu0 0
    %2364 = vmatpush1.bf16.msra.mxu0 %v2333
    %2365 = vmatprep.subr.bf16.mxu0 0
    %2366 = vmatpush2.bf16.msra.mxu0 0
    %2367 = vmatprep.subr.bf16.mxu0 0
    %2368 = vmatpush2.bf16.msra.mxu0 0
    %2369 = vmatprep.subr.bf16.mxu0 0
    %2370 = vmatpush2.bf16.msra.mxu0 0
    %2371 = vmatprep.subr.bf16.mxu0 0
    %2372 = vmatpush2.bf16.msra.mxu0 0
    %2373 = vmatprep.subr.bf16.mxu0 0
    %2374 = vmatpush2.bf16.msra.mxu0 0
    %2375 = vmatprep.subr.bf16.mxu0 0
    %2376 = vmatpush2.bf16.msra.mxu0 0
    %2377 = vmatprep.subr.bf16.mxu0 0
    %2378 = vmatpush2.bf16.msra.mxu0 0
    %2379 = vmatprep.subr.bf16.mxu0 0
    %2380 = vmatpush2.bf16.msra.mxu0 0
    %2381 = vmatprep.mubr.bf16.mxu0 0
    %2382 = vmatmul.mubr.bf16.gmra.mxu0 %v2277
    %v2383 = vpop.f32.mrf.mxu0
    %v2384 = vadd.f32 %v2299, %v2383
    %v2385 = vpop.f32.mrf.mxu0
    %v2386 = vpop.f32.mrf.mxu0
    %v2387 = vpop.f32.mrf.mxu0
    %2388 = vdwg.mxu0
    %v2389 = vmax.f32 %v2384, 0.0
    %v2390 = vpack.c.bf16 %v2389, %v2389
    %v2391 = vld [vmem:[%s9] sm:$0xf]
    %v2392 = vld [vmem:[%s9 + $0x4] sm:$0xf]
    %v2393 = vld [vmem:[%s9 + $0x8] sm:$0xf]
    %v2394 = vld [vmem:[%s9 + $0xc] sm:$0xf]
    %v2395 = vld [vmem:[%s9 + $0x10] sm:$0xf]
    %v2396 = vld [vmem:[%s9 + $0x14] sm:$0xf]
    %v2397 = vld [vmem:[%s9 + $0x18] sm:$0xf]
    %v2398 = vld [vmem:[%s9 + $0x1c] sm:$0xf]
    %v2399 = vld [vmem:[%s9 + $0x20] sm:$0xf]
    %v2400 = vld [vmem:[%s9 + $0x24] sm:$0xf]
    %v2401 = vld [vmem:[%s9 + $0x28] sm:$0xf]
    %v2402 = vld [vmem:[%s9 + $0x2c] sm:$0xf]
    %v2403 = vld [vmem:[%s9 + $0x30] sm:$0xf]
    %v2404 = vld [vmem:[%s9 + $0x34] sm:$0xf]
    %v2405 = vld [vmem:[%s9 + $0x38] sm:$0xf]
    %v2406 = vld [vmem:[%s9 + $0x3c] sm:$0xf]
    %v2407 = vld [vmem:[%s10] sm:$0x1]
    %v2409 = vlaneseq
    %v2410 = vshrl.u32 %v2409, 7
    %v2411 = vsub.s32 0, %v2410
    %v2412 = vrot.slane %v2407, %v2411
    %v2430 = vunpack.c.l.b16 %v2391
    %v2431 = vunpack.c.l.b16 %v2392
    %v2432 = vunpack.c.l.b16 %v2393
    %v2433 = vunpack.c.l.b16 %v2394
    %v2434 = vunpack.c.l.b16 %v2395
    %v2435 = vunpack.c.l.b16 %v2396
    %v2436 = vunpack.c.l.b16 %v2397
    %v2437 = vunpack.c.l.b16 %v2398
    %v2438 = vunpack.c.l.b16 %v2399
    %v2439 = vunpack.c.l.b16 %v2400
    %v2440 = vunpack.c.l.b16 %v2401
    %v2441 = vunpack.c.l.b16 %v2402
    %v2442 = vunpack.c.l.b16 %v2403
    %v2443 = vunpack.c.l.b16 %v2404
    %v2444 = vunpack.c.l.b16 %v2405
    %v2445 = vunpack.c.l.b16 %v2406
    %v2446 = vpack.c.b16 %v2431, %v2430
    %v2447 = vpack.c.b16 %v2433, %v2432
    %v2448 = vpack.c.b16 %v2435, %v2434
    %v2449 = vpack.c.b16 %v2437, %v2436
    %v2450 = vpack.c.b16 %v2439, %v2438
    %v2451 = vpack.c.b16 %v2441, %v2440
    %v2452 = vpack.c.b16 %v2443, %v2442
    %v2453 = vpack.c.b16 %v2445, %v2444
    %2462 = vmatprep.subr.bf16.mxu0 0
    %2463 = vmatpush1.bf16.msra.mxu0 %v2453
    %2464 = vmatprep.subr.bf16.mxu0 0
    %2465 = vmatpush1.bf16.msra.mxu0 %v2452
    %2466 = vmatprep.subr.bf16.mxu0 0
    %2467 = vmatpush1.bf16.msra.mxu0 %v2451
    %2468 = vmatprep.subr.bf16.mxu0 0
    %2469 = vmatpush1.bf16.msra.mxu0 %v2450
    %2470 = vmatprep.subr.bf16.mxu0 0
    %2471 = vmatpush1.bf16.msra.mxu0 %v2449
    %2472 = vmatprep.subr.bf16.mxu0 0
    %2473 = vmatpush1.bf16.msra.mxu0 %v2448
    %2474 = vmatprep.subr.bf16.mxu0 0
    %2475 = vmatpush1.bf16.msra.mxu0 %v2447
    %2476 = vmatprep.subr.bf16.mxu0 0
    %2477 = vmatpush1.bf16.msra.mxu0 %v2446
    %2478 = vmatprep.subr.bf16.mxu0 0
    %2479 = vmatpush2.bf16.msra.mxu0 0
    %2480 = vmatprep.subr.bf16.mxu0 0
    %2481 = vmatpush2.bf16.msra.mxu0 0
    %2482 = vmatprep.subr.bf16.mxu0 0
    %2483 = vmatpush2.bf16.msra.mxu0 0
    %2484 = vmatprep.subr.bf16.mxu0 0
    %2485 = vmatpush2.bf16.msra.mxu0 0
    %2486 = vmatprep.subr.bf16.mxu0 0
    %2487 = vmatpush2.bf16.msra.mxu0 0
    %2488 = vmatprep.subr.bf16.mxu0 0
    %2489 = vmatpush2.bf16.msra.mxu0 0
    %2490 = vmatprep.subr.bf16.mxu0 0
    %2491 = vmatpush2.bf16.msra.mxu0 0
    %2492 = vmatprep.subr.bf16.mxu0 0
    %2493 = vmatpush2.bf16.msra.mxu0 0
    %2494 = vmatprep.mubr.bf16.mxu0 0
    %2495 = vmatmul.mubr.bf16.gmra.mxu0 %v2390
    %v2496 = vpop.f32.mrf.mxu0
    %v2497 = vadd.f32 %v2412, %v2496
    %v2498 = vpop.f32.mrf.mxu0
    %v2499 = vpop.f32.mrf.mxu0
    %v2500 = vpop.f32.mrf.mxu0
    %2501 = vdwg.mxu0
    %2502 = vst [vmem:[%s11] sm:$0xff] %v2497
    // Predicated region
    $region54: #{deep_nn_forward.1} parent=1 // pred_check
      _
    $region55: #{deep_nn_forward.1} parent=1 // pred_check_branch
      %2504 = sbr.rel (0) target = $region57
    $region56: #{deep_nn_forward.1} parent=1 // pred_region
      _
    $region57: #{deep_nn_forward.1} parent=1 // pred_fallthru
      _
    // Predicated region
    $region58: #{deep_nn_forward.1} parent=1 // pred_check
      _
    $region59: #{deep_nn_forward.1} parent=1 // pred_check_branch
      %2506 = sbr.rel (0) target = $region61
    $region60: #{deep_nn_forward.1} parent=1 // pred_region
      _
    $region61: #{deep_nn_forward.1} parent=1 // pred_fallthru
      _
    %2507 = vsyncpa [#allocation3], 1
    %2508 = vsyncpa [#allocation5], 1

</llo_original>
